<compile_context>
chip_gen: v7x
topology: tpu7x:2x2x1
jax: 0.10.0
libtpu: 0.0.40
codegen_flags: <defaults>
</compile_context>

<pallas_src>
import jax
import jax.numpy as jnp
from jax import lax
from jax.experimental import pallas as pl
from jax.experimental.pallas import tpu as pltpu


def _round_up(x, mult):
    return ((x + mult - 1) // mult) * mult


def _vmem_capacity_bytes():
    try:
        return int(pltpu.get_tpu_info().vmem_capacity_bytes)
    except Exception:
        return 64 * 1024 * 1024  # conservative (v7x per-core) fallback


def _make_kernel(m_pad):
    """Kernel: per-row argmax index + |1 - row_sum| for one row tile."""

    def kernel(f_ref, ones_ref, idx_ref, err_ref):
        f = f_ref[...]                                   # (tile_n, m_pad), native dtype
        tn = f.shape[0]

        # argmax along lanes (first max on ties, matching torch.max / argmax).
        # Padded columns hold finfo.min so they can never beat a valid column;
        # on an exact tie the min-index rule picks the (lower) valid column.
        col = lax.broadcasted_iota(jnp.int32, (tn, m_pad), 1)
        row_max = jnp.max(f, axis=1, keepdims=True)                    # XLU max
        is_max = f == row_max
        idx_ref[...] = jnp.min(jnp.where(is_max, col, m_pad),          # XLU min
                               axis=1, keepdims=True)

        # Row sum over *valid* columns on the MXU: ones_ref is 1.0 for valid
        # columns and 0.0 for padded ones (finfo.min * 0 == 0, no mask needed).
        row_sum = jnp.dot(f, ones_ref[...],
                          precision=lax.Precision.HIGHEST,
                          preferred_element_type=jnp.float32)          # (tile_n, 1)
        err_ref[...] = jnp.abs(1.0 - row_sum)

    return kernel


def cost_loss(feature, distances, target=None, *, tile_rows=None):
    """Pallas TPU implementation of CostLoss.forward(feature, distances, target)."""
    del target  # unused by the forward pass (kept for API parity with torch)
    n, m = feature.shape
    assert distances.shape == (n, m)

    dtype = feature.dtype
    itemsize = jnp.dtype(dtype).itemsize
    sub_mult = max(8, 32 // itemsize)            # 8 (f32) / 16 (bf16) / 32 (i8) rows

    # Lane-pad the candidate axis to a multiple of 128.
    m_pad = _round_up(max(m, 1), 128)

    # --- Row-tile sizing ------------------------------------------------------
    # Target multi-MiB feature blocks.  Budget ~45% of physical VMEM for the
    # double-buffered input block + in-kernel int32/f32 intermediates.
    vmem_budget = int(_vmem_capacity_bytes() * 0.45)
    bytes_per_row = 2 * m_pad * itemsize + 6 * m_pad * 4 + 64
    if tile_rows is None:
        tile_n = max(sub_mult,
                     (vmem_budget // bytes_per_row) // sub_mult * sub_mult)
    else:
        tile_n = _round_up(tile_rows, sub_mult)
    tile_n = min(tile_n, _round_up(n, sub_mult))

    tiles = pl.cdiv(n, tile_n)
    n_pad = tiles * tile_n

    # Pad rows/columns with finfo.min (never wins the argmax; padded rows are
    # sliced off below, so their inf err contribution never reaches the sum).
    pad_value = float(jnp.finfo(dtype).min)
    f = feature
    if n_pad != n or m_pad != m:
        f = jnp.pad(f, ((0, n_pad - n), (0, m_pad - m)),
                    constant_values=pad_value)

    # Column-validity ones vector for the MXU row-sum (resident, tiny).
    ones_col = (jnp.arange(m_pad) < m).astype(dtype).reshape(m_pad, 1)

    vmem_limit = max(32 * 1024 * 1024, vmem_budget)

    idx_col, err_col = pl.pallas_call(
        _make_kernel(m_pad),
        out_shape=(jax.ShapeDtypeStruct((n_pad, 1), jnp.int32),
                   jax.ShapeDtypeStruct((n_pad, 1), jnp.float32)),
        grid=(tiles,),
        in_specs=[pl.BlockSpec((tile_n, m_pad), lambda i: (i, 0)),
                  pl.BlockSpec((m_pad, 1), lambda i: (0, 0))],
        out_specs=(pl.BlockSpec((tile_n, 1), lambda i: (i, 0)),
                   pl.BlockSpec((tile_n, 1), lambda i: (i, 0))),
        compiler_params=pltpu.CompilerParams(
            dimension_semantics=("parallel",),   # independent row tiles
            vmem_limit_bytes=vmem_limit,
        ),
        cost_estimate=pl.CostEstimate(
            flops=7 * n_pad * m_pad,
            transcendentals=0,
            bytes_accessed=n_pad * m_pad * itemsize + m_pad * itemsize + n_pad * 8,
        ),
    )(f, ones_col)

    idx = idx_col[:n, 0]
    err = err_col[:n, 0]

    # Tiny epilogue in plain JAX: gather one distance per row + the two sums.
    gathered = jnp.take_along_axis(distances, idx[:, None], axis=1)[:, 0]
    return jnp.sum(gathered) + jnp.sum(err)


def cost_loss_ref(feature, distances):
    """Pure-JAX reference for correctness checking."""
    idx = jnp.argmax(feature, axis=1)
    gathered = jnp.take_along_axis(distances, idx[:, None], axis=1)[:, 0]
    approx_cost = jnp.sum(gathered)
    err2 = jnp.sum(jnp.abs(1.0 - jnp.sum(feature, axis=1)))
    return approx_cost + err2


if __name__ == "__main__":
    key = jax.random.PRNGKey(0)
    k1, k2, k3, k4, k5, k6 = jax.random.split(key, 6)

    # Case 1: the original module's shape (n = m = 100).
    N = M = 100
    feature = jax.random.uniform(k1, (N, M), dtype=jnp.float32)
    distances = jax.random.uniform(k2, (N, M), dtype=jnp.float32)
    target = jnp.zeros((N,), dtype=jnp.int32)  # unused by the forward pass

    out = jax.block_until_ready(cost_loss(feature, distances, target))
    ref = cost_loss_ref(feature, distances)
    assert jnp.allclose(out, ref, rtol=1e-3, atol=1e-1), (out, ref)

    # Case 2: multi-tile path + row/column padding (forced small row tile).
    N2, M2 = 200, 100
    feature2 = jax.random.uniform(k3, (N2, M2), dtype=jnp.float32)
    distances2 = jax.random.uniform(k4, (N2, M2), dtype=jnp.float32)
    out2 = jax.block_until_ready(
        cost_loss(feature2, distances2, None, tile_rows=64))
    ref2 = cost_loss_ref(feature2, distances2)
    assert jnp.allclose(out2, ref2, rtol=1e-3, atol=1e-1), (out2, ref2)

    # Case 3: lane-exact M (no column padding path).
    N3, M3 = 64, 256
    feature3 = jax.random.uniform(k5, (N3, M3), dtype=jnp.float32)
    distances3 = jax.random.uniform(k6, (N3, M3), dtype=jnp.float32)
    out3 = jax.block_until_ready(cost_loss(feature3, distances3))
    ref3 = cost_loss_ref(feature3, distances3)
    assert jnp.allclose(out3, ref3, rtol=1e-3, atol=1e-1), (out3, ref3)

    print("KERNEL_OK")
</pallas_src>

<mosaic_0001>
module attributes {stable_mosaic.version = 11 : i64} {
  func.func @kernel(%arg0: i32, %arg1: memref<104x128xf32, #tpu.memory_space<vmem>>, %arg2: memref<128x1xf32, #tpu.memory_space<vmem>>, %arg3: memref<104x1xi32, #tpu.memory_space<vmem>>, %arg4: memref<104x1xf32, #tpu.memory_space<vmem>>) attributes {dimension_semantics = [#tpu.dimension_semantics<parallel>], iteration_bounds = array<i64: 1>, scalar_prefetch = 0 : i64, scratch_operands = 0 : i64, tpu.core_type = #tpu.core_type<tc>, window_params = [{transform_indices = @transform_0, window_bounds = array<i64: 104, 128>}, {pipeline_mode = #tpu.pipeline_mode<synchronous>, transform_indices = @transform_1, window_bounds = array<i64: 128, 1>}, {transform_indices = @transform_2, window_bounds = array<i64: 104, 1>}, {transform_indices = @transform_3, window_bounds = array<i64: 104, 1>}]} {
    %c0 = arith.constant 0 : index
    %c0_0 = arith.constant 0 : index
    %0 = vector.load %arg1[%c0, %c0_0] : memref<104x128xf32, #tpu.memory_space<vmem>>, vector<104x128xf32>
    %1 = tpu.iota {dimensions = array<i32: 1>} : vector<104x128xi32>
    %cst = arith.constant dense<0xFF800000> : vector<104xf32>
    %2 = vector.multi_reduction <maximumf>, %0, %cst [1] : vector<104x128xf32> to vector<104xf32>
    %3 = vector.shape_cast %2 : vector<104xf32> to vector<104x1xf32>
    %4 = vector.broadcast %3 : vector<104x1xf32> to vector<104x128xf32>
    %5 = arith.cmpf oeq, %0, %4 : vector<104x128xf32>
    %c128_i32 = arith.constant 128 : i32
    %6 = vector.broadcast %c128_i32 : i32 to vector<104x128xi32>
    %7 = arith.select %5, %1, %6 : vector<104x128xi1>, vector<104x128xi32>
    %cst_1 = arith.constant dense<2147483647> : vector<104xi32>
    %8 = vector.multi_reduction <minsi>, %7, %cst_1 [1] : vector<104x128xi32> to vector<104xi32>
    %9 = vector.shape_cast %8 : vector<104xi32> to vector<104x1xi32>
    %c0_2 = arith.constant 0 : index
    %c0_3 = arith.constant 0 : index
    %10 = vector.load %arg3[%c0_2, %c0_3] : memref<104x1xi32, #tpu.memory_space<vmem>>, vector<104x1xi32>
    tpu.vector_store %arg3[%c0_2, %c0_3], %9 {strides = array<i32>} : memref<104x1xi32, #tpu.memory_space<vmem>>, vector<104x1xi32>,
    %c0_4 = arith.constant 0 : index
    %c0_5 = arith.constant 0 : index
    %11 = vector.load %arg2[%c0_4, %c0_5] : memref<128x1xf32, #tpu.memory_space<vmem>>, vector<128x1xf32>
    %cst_6 = arith.constant dense<0.000000e+00> : vector<104x1xf32>
    %12 = tpu.matmul %0, %11, %cst_6 {dimension_numbers = #tpu.dot_dimension_numbers<[1], [0], [0], [1], [0, 0, 1, 1], [], []>, precision = #tpu.contract_precision<fp32>} : vector<104x128xf32>, vector<128x1xf32>, vector<104x1xf32> -> vector<104x1xf32>
    %cst_7 = arith.constant 1.000000e+00 : f32
    %13 = vector.broadcast %cst_7 : f32 to vector<104x1xf32>
    %14 = arith.subf %13, %12 : vector<104x1xf32>
    %15 = math.absf %14 : vector<104x1xf32>
    %c0_8 = arith.constant 0 : index
    %c0_9 = arith.constant 0 : index
    %16 = vector.load %arg4[%c0_8, %c0_9] : memref<104x1xf32, #tpu.memory_space<vmem>>, vector<104x1xf32>
    tpu.vector_store %arg4[%c0_8, %c0_9], %15 {strides = array<i32>} : memref<104x1xf32, #tpu.memory_space<vmem>>, vector<104x1xf32>,
    return
  }
  func.func @transform_0(%arg0: i32) -> (i32, i32) {
    %c0_i32 = arith.constant 0 : i32
    %c0_i32_0 = arith.constant 0 : i32
    return %arg0, %c0_i32 : i32, i32
  }
  func.func @transform_1(%arg0: i32) -> (i32, i32) {
    %c0_i32 = arith.constant 0 : i32
    %c0_i32_0 = arith.constant 0 : i32
    %c0_i32_1 = arith.constant 0 : i32
    return %c0_i32, %c0_i32_0 : i32, i32
  }
  func.func @transform_2(%arg0: i32) -> (i32, i32) {
    %c0_i32 = arith.constant 0 : i32
    %c0_i32_0 = arith.constant 0 : i32
    return %arg0, %c0_i32 : i32, i32
  }
  func.func @transform_3(%arg0: i32) -> (i32, i32) {
    %c0_i32 = arith.constant 0 : i32
    %c0_i32_0 = arith.constant 0 : i32
    return %arg0, %c0_i32 : i32, i32
  }
}

</mosaic_0001>

<llo_original>
// kernel: tpu_custom_call.1
$region0: #{tpu_custom_call.1}
  #allocation0 [shape = 'u32[]', space=smem, size = 0x4, offset = 0x4, fixed_abs, tag = 'smem constant byte address 0x4 - core index']
  #allocation1 [shape = 'u32[144,128]{1,0:T(1,128)}', space=vmem, size = 0x12000, scoped, tag = 'internal scratch']
  %s0 = inlined_call_operand.vmem [shape: f32[104,128], index: 0, kind: input, shape index: {}]
  %s1 = inlined_call_operand.vmem [shape: f32[128,1], index: 1, kind: input, shape index: {}]
  %s2 = inlined_call_operand.vmem [shape: s32[104,1], index: 2, kind: output, shape index: {0}]
  %s3 = inlined_call_operand.vmem [shape: f32[104,1], index: 3, kind: output, shape index: {1}]
  %4 = xla_tuple %s2, %s3
  %s5 = sld [smem:[#allocation0]]
  $region26: #{tpu_custom_call.1} parent=0
    _
  %s7 = ssub.s32 1, %s5
  %s8 = scalar_select 0, %s7, %s5
  // Predicated region
  $region2: #{tpu_custom_call.1} parent=0 // pred_check
    _
  $region3: #{tpu_custom_call.1} parent=0 // pred_check_branch
    %10 = sbr.rel (0) target = $region5
  $region4: #{tpu_custom_call.1} parent=0 // pred_region
    _
  $region5: #{tpu_custom_call.1} parent=0 // pred_fallthru
    _
  // Predicated region
  $region6: #{tpu_custom_call.1} parent=0 // pred_check
    _
  $region7: #{tpu_custom_call.1} parent=0 // pred_check_branch
    %12 = sbr.rel (0) target = $region9
  $region8: #{tpu_custom_call.1} parent=0 // pred_region
    _
  $region9: #{tpu_custom_call.1} parent=0 // pred_fallthru
    _
  %v13 = vld [vmem:[%s0] sm:$0xff]
  %v14 = vld [vmem:[%s0 + $0x8] sm:$0xff]
  %v15 = vld [vmem:[%s0 + $0x10] sm:$0xff]
  %v16 = vld [vmem:[%s0 + $0x18] sm:$0xff]
  %v17 = vld [vmem:[%s0 + $0x20] sm:$0xff]
  %v18 = vld [vmem:[%s0 + $0x28] sm:$0xff]
  %v19 = vld [vmem:[%s0 + $0x30] sm:$0xff]
  %v20 = vld [vmem:[%s0 + $0x38] sm:$0xff]
  %v21 = vld [vmem:[%s0 + $0x40] sm:$0xff]
  %v22 = vld [vmem:[%s0 + $0x48] sm:$0xff]
  %v23 = vld [vmem:[%s0 + $0x50] sm:$0xff]
  %v24 = vld [vmem:[%s0 + $0x58] sm:$0xff]
  %v25 = vld [vmem:[%s0 + $0x60] sm:$0xff]
  %v26 = vlaneseq
  %v27 = vand.u32 %v26, 127
  %28 = vmax.xlane.f32.xlu0 %v13
  %v29 = vpop.xlane.xlu0 %28
  %30 = vmax.xlane.f32.xlu0 %v14
  %v31 = vpop.xlane.xlu0 %30
  %32 = vmax.xlane.f32.xlu0 %v15
  %v33 = vpop.xlane.xlu0 %32
  %34 = vmax.xlane.f32.xlu0 %v16
  %v35 = vpop.xlane.xlu0 %34
  %36 = vmax.xlane.f32.xlu0 %v17
  %v37 = vpop.xlane.xlu0 %36
  %38 = vmax.xlane.f32.xlu0 %v18
  %v39 = vpop.xlane.xlu0 %38
  %40 = vmax.xlane.f32.xlu0 %v19
  %v41 = vpop.xlane.xlu0 %40
  %42 = vmax.xlane.f32.xlu0 %v20
  %v43 = vpop.xlane.xlu0 %42
  %44 = vmax.xlane.f32.xlu0 %v21
  %v45 = vpop.xlane.xlu0 %44
  %46 = vmax.xlane.f32.xlu0 %v22
  %v47 = vpop.xlane.xlu0 %46
  %48 = vmax.xlane.f32.xlu0 %v23
  %v49 = vpop.xlane.xlu0 %48
  %50 = vmax.xlane.f32.xlu0 %v24
  %v51 = vpop.xlane.xlu0 %50
  %52 = vmax.xlane.f32.xlu0 %v25
  %v53 = vpop.xlane.xlu0 %52
  %vm54 = vcmp.eq.f32.partialorder %v13, %v29
  %vm55 = vcmp.eq.f32.partialorder %v14, %v31
  %vm56 = vcmp.eq.f32.partialorder %v15, %v33
  %vm57 = vcmp.eq.f32.partialorder %v16, %v35
  %vm58 = vcmp.eq.f32.partialorder %v17, %v37
  %vm59 = vcmp.eq.f32.partialorder %v18, %v39
  %vm60 = vcmp.eq.f32.partialorder %v19, %v41
  %vm61 = vcmp.eq.f32.partialorder %v20, %v43
  %vm62 = vcmp.eq.f32.partialorder %v21, %v45
  %vm63 = vcmp.eq.f32.partialorder %v22, %v47
  %vm64 = vcmp.eq.f32.partialorder %v23, %v49
  %vm65 = vcmp.eq.f32.partialorder %v24, %v51
  %vm66 = vcmp.eq.f32.partialorder %v25, %v53
  %v67 = vsel %vm54, %v27, 128
  %v68 = vsel %vm55, %v27, 128
  %v69 = vsel %vm56, %v27, 128
  %v70 = vsel %vm57, %v27, 128
  %v71 = vsel %vm58, %v27, 128
  %v72 = vsel %vm59, %v27, 128
  %v73 = vsel %vm60, %v27, 128
  %v74 = vsel %vm61, %v27, 128
  %v75 = vsel %vm62, %v27, 128
  %v76 = vsel %vm63, %v27, 128
  %v77 = vsel %vm64, %v27, 128
  %v78 = vsel %vm65, %v27, 128
  %v79 = vsel %vm66, %v27, 128
  %v80 = vand.u32 %v67, 65535
  %v81 = vshra.s32 %v67, 16
  %v82 = vcvt.s32.f32 %v80
  %v83 = vcvt.s32.f32 %v81
  %84 = vmin.xlane.f32.xlu0 %v83
  %v85 = vpop.xlane.xlu0 %84
  %vm86 = vcmp.eq.f32.partialorder %v83, %v85
  %v87 = vsel %vm86, %v82, inf
  %88 = vmin.xlane.f32.xlu0 %v87
  %v89 = vpop.xlane.xlu0 %88
  %v90 = vcvt.f32.s32 %v89
  %v91 = vcvt.f32.s32 %v85
  %v92 = vshll.u32 %v91, 16
  %v93 = vadd.s32 %v92, %v90
  %v94 = vand.u32 %v68, 65535
  %v95 = vshra.s32 %v68, 16
  %v96 = vcvt.s32.f32 %v94
  %v97 = vcvt.s32.f32 %v95
  %98 = vmin.xlane.f32.xlu0 %v97
  %v99 = vpop.xlane.xlu0 %98
  %vm100 = vcmp.eq.f32.partialorder %v97, %v99
  %v101 = vsel %vm100, %v96, inf
  %102 = vmin.xlane.f32.xlu0 %v101
  %v103 = vpop.xlane.xlu0 %102
  %v104 = vcvt.f32.s32 %v103
  %v105 = vcvt.f32.s32 %v99
  %v106 = vshll.u32 %v105, 16
  %v107 = vadd.s32 %v106, %v104
  %v108 = vand.u32 %v69, 65535
  %v109 = vshra.s32 %v69, 16
  %v110 = vcvt.s32.f32 %v108
  %v111 = vcvt.s32.f32 %v109
  %112 = vmin.xlane.f32.xlu0 %v111
  %v113 = vpop.xlane.xlu0 %112
  %vm114 = vcmp.eq.f32.partialorder %v111, %v113
  %v115 = vsel %vm114, %v110, inf
  %116 = vmin.xlane.f32.xlu0 %v115
  %v117 = vpop.xlane.xlu0 %116
  %v118 = vcvt.f32.s32 %v117
  %v119 = vcvt.f32.s32 %v113
  %v120 = vshll.u32 %v119, 16
  %v121 = vadd.s32 %v120, %v118
  %v122 = vand.u32 %v70, 65535
  %v123 = vshra.s32 %v70, 16
  %v124 = vcvt.s32.f32 %v122
  %v125 = vcvt.s32.f32 %v123
  %126 = vmin.xlane.f32.xlu0 %v125
  %v127 = vpop.xlane.xlu0 %126
  %vm128 = vcmp.eq.f32.partialorder %v125, %v127
  %v129 = vsel %vm128, %v124, inf
  %130 = vmin.xlane.f32.xlu0 %v129
  %v131 = vpop.xlane.xlu0 %130
  %v132 = vcvt.f32.s32 %v131
  %v133 = vcvt.f32.s32 %v127
  %v134 = vshll.u32 %v133, 16
  %v135 = vadd.s32 %v134, %v132
  %v136 = vand.u32 %v71, 65535
  %v137 = vshra.s32 %v71, 16
  %v138 = vcvt.s32.f32 %v136
  %v139 = vcvt.s32.f32 %v137
  %140 = vmin.xlane.f32.xlu0 %v139
  %v141 = vpop.xlane.xlu0 %140
  %vm142 = vcmp.eq.f32.partialorder %v139, %v141
  %v143 = vsel %vm142, %v138, inf
  %144 = vmin.xlane.f32.xlu0 %v143
  %v145 = vpop.xlane.xlu0 %144
  %v146 = vcvt.f32.s32 %v145
  %v147 = vcvt.f32.s32 %v141
  %v148 = vshll.u32 %v147, 16
  %v149 = vadd.s32 %v148, %v146
  %v150 = vand.u32 %v72, 65535
  %v151 = vshra.s32 %v72, 16
  %v152 = vcvt.s32.f32 %v150
  %v153 = vcvt.s32.f32 %v151
  %154 = vmin.xlane.f32.xlu0 %v153
  %v155 = vpop.xlane.xlu0 %154
  %vm156 = vcmp.eq.f32.partialorder %v153, %v155
  %v157 = vsel %vm156, %v152, inf
  %158 = vmin.xlane.f32.xlu0 %v157
  %v159 = vpop.xlane.xlu0 %158
  %v160 = vcvt.f32.s32 %v159
  %v161 = vcvt.f32.s32 %v155
  %v162 = vshll.u32 %v161, 16
  %v163 = vadd.s32 %v162, %v160
  %v164 = vand.u32 %v73, 65535
  %v165 = vshra.s32 %v73, 16
  %v166 = vcvt.s32.f32 %v164
  %v167 = vcvt.s32.f32 %v165
  %168 = vmin.xlane.f32.xlu0 %v167
  %v169 = vpop.xlane.xlu0 %168
  %vm170 = vcmp.eq.f32.partialorder %v167, %v169
  %v171 = vsel %vm170, %v166, inf
  %172 = vmin.xlane.f32.xlu0 %v171
  %v173 = vpop.xlane.xlu0 %172
  %v174 = vcvt.f32.s32 %v173
  %v175 = vcvt.f32.s32 %v169
  %v176 = vshll.u32 %v175, 16
  %v177 = vadd.s32 %v176, %v174
  %v178 = vand.u32 %v74, 65535
  %v179 = vshra.s32 %v74, 16
  %v180 = vcvt.s32.f32 %v178
  %v181 = vcvt.s32.f32 %v179
  %182 = vmin.xlane.f32.xlu0 %v181
  %v183 = vpop.xlane.xlu0 %182
  %vm184 = vcmp.eq.f32.partialorder %v181, %v183
  %v185 = vsel %vm184, %v180, inf
  %186 = vmin.xlane.f32.xlu0 %v185
  %v187 = vpop.xlane.xlu0 %186
  %v188 = vcvt.f32.s32 %v187
  %v189 = vcvt.f32.s32 %v183
  %v190 = vshll.u32 %v189, 16
  %v191 = vadd.s32 %v190, %v188
  %v192 = vand.u32 %v75, 65535
  %v193 = vshra.s32 %v75, 16
  %v194 = vcvt.s32.f32 %v192
  %v195 = vcvt.s32.f32 %v193
  %196 = vmin.xlane.f32.xlu0 %v195
  %v197 = vpop.xlane.xlu0 %196
  %vm198 = vcmp.eq.f32.partialorder %v195, %v197
  %v199 = vsel %vm198, %v194, inf
  %200 = vmin.xlane.f32.xlu0 %v199
  %v201 = vpop.xlane.xlu0 %200
  %v202 = vcvt.f32.s32 %v201
  %v203 = vcvt.f32.s32 %v197
  %v204 = vshll.u32 %v203, 16
  %v205 = vadd.s32 %v204, %v202
  %v206 = vand.u32 %v76, 65535
  %v207 = vshra.s32 %v76, 16
  %v208 = vcvt.s32.f32 %v206
  %v209 = vcvt.s32.f32 %v207
  %210 = vmin.xlane.f32.xlu0 %v209
  %v211 = vpop.xlane.xlu0 %210
  %vm212 = vcmp.eq.f32.partialorder %v209, %v211
  %v213 = vsel %vm212, %v208, inf
  %214 = vmin.xlane.f32.xlu0 %v213
  %v215 = vpop.xlane.xlu0 %214
  %v216 = vcvt.f32.s32 %v215
  %v217 = vcvt.f32.s32 %v211
  %v218 = vshll.u32 %v217, 16
  %v219 = vadd.s32 %v218, %v216
  %v220 = vand.u32 %v77, 65535
  %v221 = vshra.s32 %v77, 16
  %v222 = vcvt.s32.f32 %v220
  %v223 = vcvt.s32.f32 %v221
  %224 = vmin.xlane.f32.xlu0 %v223
  %v225 = vpop.xlane.xlu0 %224
  %vm226 = vcmp.eq.f32.partialorder %v223, %v225
  %v227 = vsel %vm226, %v222, inf
  %228 = vmin.xlane.f32.xlu0 %v227
  %v229 = vpop.xlane.xlu0 %228
  %v230 = vcvt.f32.s32 %v229
  %v231 = vcvt.f32.s32 %v225
  %v232 = vshll.u32 %v231, 16
  %v233 = vadd.s32 %v232, %v230
  %v234 = vand.u32 %v78, 65535
  %v235 = vshra.s32 %v78, 16
  %v236 = vcvt.s32.f32 %v234
  %v237 = vcvt.s32.f32 %v235
  %238 = vmin.xlane.f32.xlu0 %v237
  %v239 = vpop.xlane.xlu0 %238
  %vm240 = vcmp.eq.f32.partialorder %v237, %v239
  %v241 = vsel %vm240, %v236, inf
  %242 = vmin.xlane.f32.xlu0 %v241
  %v243 = vpop.xlane.xlu0 %242
  %v244 = vcvt.f32.s32 %v243
  %v245 = vcvt.f32.s32 %v239
  %v246 = vshll.u32 %v245, 16
  %v247 = vadd.s32 %v246, %v244
  %v248 = vand.u32 %v79, 65535
  %v249 = vshra.s32 %v79, 16
  %v250 = vcvt.s32.f32 %v248
  %v251 = vcvt.s32.f32 %v249
  %252 = vmin.xlane.f32.xlu0 %v251
  %v253 = vpop.xlane.xlu0 %252
  %vm254 = vcmp.eq.f32.partialorder %v251, %v253
  %v255 = vsel %vm254, %v250, inf
  %256 = vmin.xlane.f32.xlu0 %v255
  %v257 = vpop.xlane.xlu0 %256
  %v258 = vcvt.f32.s32 %v257
  %v259 = vcvt.f32.s32 %v253
  %v260 = vshll.u32 %v259, 16
  %v261 = vadd.s32 %v260, %v258
  %vm262 = vcmask 7168
  %263 = vst.msk [vmem:[%s2] sm:$0xff] %vm262, %v93
  %264 = vst.msk [vmem:[%s2 + $0x8] sm:$0xff] %vm262, %v107
  %265 = vst.msk [vmem:[%s2 + $0x10] sm:$0xff] %vm262, %v121
  %266 = vst.msk [vmem:[%s2 + $0x18] sm:$0xff] %vm262, %v135
  %267 = vst.msk [vmem:[%s2 + $0x20] sm:$0xff] %vm262, %v149
  %268 = vst.msk [vmem:[%s2 + $0x28] sm:$0xff] %vm262, %v163
  %269 = vst.msk [vmem:[%s2 + $0x30] sm:$0xff] %vm262, %v177
  %270 = vst.msk [vmem:[%s2 + $0x38] sm:$0xff] %vm262, %v191
  %271 = vst.msk [vmem:[%s2 + $0x40] sm:$0xff] %vm262, %v205
  %272 = vst.msk [vmem:[%s2 + $0x48] sm:$0xff] %vm262, %v219
  %273 = vst.msk [vmem:[%s2 + $0x50] sm:$0xff] %vm262, %v233
  %274 = vst.msk [vmem:[%s2 + $0x58] sm:$0xff] %vm262, %v247
  %275 = vst.msk [vmem:[%s2 + $0x60] sm:$0xff] %vm262, %v261
  %v276 = vld [vmem:[%s1] sm:$0xff]
  %v277 = vld [vmem:[%s1 + $0x8] sm:$0xff]
  %v278 = vld [vmem:[%s1 + $0x10] sm:$0xff]
  %v279 = vld [vmem:[%s1 + $0x18] sm:$0xff]
  %v280 = vld [vmem:[%s1 + $0x20] sm:$0xff]
  %v281 = vld [vmem:[%s1 + $0x28] sm:$0xff]
  %v282 = vld [vmem:[%s1 + $0x30] sm:$0xff]
  %v283 = vld [vmem:[%s1 + $0x38] sm:$0xff]
  %v284 = vld [vmem:[%s1 + $0x40] sm:$0xff]
  %v285 = vld [vmem:[%s1 + $0x48] sm:$0xff]
  %v286 = vld [vmem:[%s1 + $0x50] sm:$0xff]
  %v287 = vld [vmem:[%s1 + $0x58] sm:$0xff]
  %v288 = vld [vmem:[%s1 + $0x60] sm:$0xff]
  %v289 = vld [vmem:[%s1 + $0x68] sm:$0xff]
  %v290 = vld [vmem:[%s1 + $0x70] sm:$0xff]
  %v291 = vld [vmem:[%s1 + $0x78] sm:$0xff]
  %292 = vmatprep.subr.mxu0 0.0
  %v293 = vand.u32 %v276, 4294901760
  %294 = vmatpush1.msra.mxu0 %v293
  %295 = vmatprep.subr.mxu0 0.0
  %v296 = vand.u32 %v277, 4294901760
  %297 = vmatpush1.msra.mxu0 %v296
  %298 = vmatprep.subr.mxu0 0.0
  %v299 = vand.u32 %v278, 4294901760
  %300 = vmatpush1.msra.mxu0 %v299
  %301 = vmatprep.subr.mxu0 0.0
  %v302 = vand.u32 %v279, 4294901760
  %303 = vmatpush1.msra.mxu0 %v302
  %304 = vmatprep.subr.mxu0 0.0
  %v305 = vand.u32 %v280, 4294901760
  %306 = vmatpush1.msra.mxu0 %v305
  %307 = vmatprep.subr.mxu0 0.0
  %v308 = vand.u32 %v281, 4294901760
  %309 = vmatpush1.msra.mxu0 %v308
  %310 = vmatprep.subr.mxu0 0.0
  %v311 = vand.u32 %v282, 4294901760
  %312 = vmatpush1.msra.mxu0 %v311
  %313 = vmatprep.subr.mxu0 0.0
  %v314 = vand.u32 %v283, 4294901760
  %315 = vmatpush1.msra.mxu0 %v314
  %316 = vmatprep.subr.mxu0 0.0
  %v317 = vand.u32 %v284, 4294901760
  %318 = vmatpush1.msra.mxu0 %v317
  %319 = vmatprep.subr.mxu0 0.0
  %v320 = vand.u32 %v285, 4294901760
  %321 = vmatpush1.msra.mxu0 %v320
  %322 = vmatprep.subr.mxu0 0.0
  %v323 = vand.u32 %v286, 4294901760
  %324 = vmatpush1.msra.mxu0 %v323
  %325 = vmatprep.subr.mxu0 0.0
  %v326 = vand.u32 %v287, 4294901760
  %327 = vmatpush1.msra.mxu0 %v326
  %328 = vmatprep.subr.mxu0 0.0
  %v329 = vand.u32 %v288, 4294901760
  %330 = vmatpush1.msra.mxu0 %v329
  %331 = vmatprep.subr.mxu0 0.0
  %v332 = vand.u32 %v289, 4294901760
  %333 = vmatpush1.msra.mxu0 %v332
  %334 = vmatprep.subr.mxu0 0.0
  %v335 = vand.u32 %v290, 4294901760
  %336 = vmatpush1.msra.mxu0 %v335
  %337 = vmatprep.subr.mxu0 0.0
  %v338 = vand.u32 %v291, 4294901760
  %339 = vmatpush1.msra.mxu0 %v338
  %340 = vmatprep.subr.mxu0 0.0
  %341 = vmatpush1.msra.mxu0 0.0
  %342 = vmatprep.subr.mxu0 0.0
  %343 = vmatpush1.msra.mxu0 0.0
  %344 = vmatprep.subr.mxu0 0.0
  %345 = vmatpush1.msra.mxu0 0.0
  %346 = vmatprep.subr.mxu0 0.0
  %347 = vmatpush1.msra.mxu0 0.0
  %348 = vmatprep.subr.mxu0 0.0
  %349 = vmatpush1.msra.mxu0 0.0
  %350 = vmatprep.subr.mxu0 0.0
  %351 = vmatpush1.msra.mxu0 0.0
  %352 = vmatprep.subr.mxu0 0.0
  %353 = vmatpush1.msra.mxu0 0.0
  %354 = vmatprep.subr.mxu0 0.0
  %355 = vmatpush1.msra.mxu0 0.0
  %356 = vmatprep.subr.mxu0 0.0
  %357 = vmatpush1.msra.mxu0 0.0
  %358 = vmatprep.subr.mxu0 0.0
  %359 = vmatpush1.msra.mxu0 0.0
  %360 = vmatprep.subr.mxu0 0.0
  %361 = vmatpush1.msra.mxu0 0.0
  %362 = vmatprep.subr.mxu0 0.0
  %363 = vmatpush1.msra.mxu0 0.0
  %364 = vmatprep.subr.mxu0 0.0
  %365 = vmatpush1.msra.mxu0 0.0
  %366 = vmatprep.subr.mxu0 0.0
  %367 = vmatpush1.msra.mxu0 0.0
  %368 = vmatprep.subr.mxu0 0.0
  %369 = vmatpush1.msra.mxu0 0.0
  %370 = vmatprep.subr.mxu0 0.0
  %371 = vmatpush1.msra.mxu0 0.0
  %372 = vmatprep.mubr.f32.mxu0 0.0
  %v373 = vand.u32 %v13, 4294901760
  %v374 = vsub.f32 %v13, %v373
  %v375 = vand.u32 %v374, 4294901760
  %v376 = vsub.f32 %v374, %v375
  %v377 = vand.u32 %v376, 4294901760
  %378 = vmatmul.mubr.f32.gmra.mrb[0].mxu0 %v377
  %v379 = vpop.f32.mrb[0].mxu0
  %v380 = vadd.f32 0.0, %v379
  %v381 = vpop.f32.mrb[0].mxu0
  %382 = vmatprep.mubr.f32.mxu0 0.0
  %v383 = vand.u32 %v14, 4294901760
  %v384 = vsub.f32 %v14, %v383
  %v385 = vand.u32 %v384, 4294901760
  %v386 = vsub.f32 %v384, %v385
  %v387 = vand.u32 %v386, 4294901760
  %388 = vmatmul.mubr.f32.gmra.mrb[0].mxu0 %v387
  %v389 = vpop.f32.mrb[0].mxu0
  %v390 = vadd.f32 0.0, %v389
  %v391 = vpop.f32.mrb[0].mxu0
  %392 = vmatprep.mubr.f32.mxu0 0.0
  %v393 = vand.u32 %v15, 4294901760
  %v394 = vsub.f32 %v15, %v393
  %v395 = vand.u32 %v394, 4294901760
  %v396 = vsub.f32 %v394, %v395
  %v397 = vand.u32 %v396, 4294901760
  %398 = vmatmul.mubr.f32.gmra.mrb[0].mxu0 %v397
  %v399 = vpop.f32.mrb[0].mxu0
  %v400 = vadd.f32 0.0, %v399
  %v401 = vpop.f32.mrb[0].mxu0
  %402 = vmatprep.mubr.f32.mxu0 0.0
  %v403 = vand.u32 %v16, 4294901760
  %v404 = vsub.f32 %v16, %v403
  %v405 = vand.u32 %v404, 4294901760
  %v406 = vsub.f32 %v404, %v405
  %v407 = vand.u32 %v406, 4294901760
  %408 = vmatmul.mubr.f32.gmra.mrb[0].mxu0 %v407
  %v409 = vpop.f32.mrb[0].mxu0
  %v410 = vadd.f32 0.0, %v409
  %v411 = vpop.f32.mrb[0].mxu0
  %412 = vmatprep.mubr.f32.mxu0 0.0
  %v413 = vand.u32 %v17, 4294901760
  %v414 = vsub.f32 %v17, %v413
  %v415 = vand.u32 %v414, 4294901760
  %v416 = vsub.f32 %v414, %v415
  %v417 = vand.u32 %v416, 4294901760
  %418 = vmatmul.mubr.f32.gmra.mrb[0].mxu0 %v417
  %v419 = vpop.f32.mrb[0].mxu0
  %v420 = vadd.f32 0.0, %v419
  %v421 = vpop.f32.mrb[0].mxu0
  %422 = vmatprep.mubr.f32.mxu0 0.0
  %v423 = vand.u32 %v18, 4294901760
  %v424 = vsub.f32 %v18, %v423
  %v425 = vand.u32 %v424, 4294901760
  %v426 = vsub.f32 %v424, %v425
  %v427 = vand.u32 %v426, 4294901760
  %428 = vmatmul.mubr.f32.gmra.mrb[0].mxu0 %v427
  %v429 = vpop.f32.mrb[0].mxu0
  %v430 = vadd.f32 0.0, %v429
  %v431 = vpop.f32.mrb[0].mxu0
  %432 = vmatprep.mubr.f32.mxu0 0.0
  %v433 = vand.u32 %v19, 4294901760
  %v434 = vsub.f32 %v19, %v433
  %v435 = vand.u32 %v434, 4294901760
  %v436 = vsub.f32 %v434, %v435
  %v437 = vand.u32 %v436, 4294901760
  %438 = vmatmul.mubr.f32.gmra.mrb[0].mxu0 %v437
  %v439 = vpop.f32.mrb[0].mxu0
  %v440 = vadd.f32 0.0, %v439
  %v441 = vpop.f32.mrb[0].mxu0
  %442 = vmatprep.mubr.f32.mxu0 0.0
  %v443 = vand.u32 %v20, 4294901760
  %v444 = vsub.f32 %v20, %v443
  %v445 = vand.u32 %v444, 4294901760
  %v446 = vsub.f32 %v444, %v445
  %v447 = vand.u32 %v446, 4294901760
  %448 = vmatmul.mubr.f32.gmra.mrb[0].mxu0 %v447
  %v449 = vpop.f32.mrb[0].mxu0
  %v450 = vadd.f32 0.0, %v449
  %v451 = vpop.f32.mrb[0].mxu0
  %452 = vmatprep.mubr.f32.mxu0 0.0
  %v453 = vand.u32 %v21, 4294901760
  %v454 = vsub.f32 %v21, %v453
  %v455 = vand.u32 %v454, 4294901760
  %v456 = vsub.f32 %v454, %v455
  %v457 = vand.u32 %v456, 4294901760
  %458 = vmatmul.mubr.f32.gmra.mrb[0].mxu0 %v457
  %v459 = vpop.f32.mrb[0].mxu0
  %v460 = vadd.f32 0.0, %v459
  %v461 = vpop.f32.mrb[0].mxu0
  %462 = vmatprep.mubr.f32.mxu0 0.0
  %v463 = vand.u32 %v22, 4294901760
  %v464 = vsub.f32 %v22, %v463
  %v465 = vand.u32 %v464, 4294901760
  %v466 = vsub.f32 %v464, %v465
  %v467 = vand.u32 %v466, 4294901760
  %468 = vmatmul.mubr.f32.gmra.mrb[0].mxu0 %v467
  %v469 = vpop.f32.mrb[0].mxu0
  %v470 = vadd.f32 0.0, %v469
  %v471 = vpop.f32.mrb[0].mxu0
  %472 = vmatprep.mubr.f32.mxu0 0.0
  %v473 = vand.u32 %v23, 4294901760
  %v474 = vsub.f32 %v23, %v473
  %v475 = vand.u32 %v474, 4294901760
  %v476 = vsub.f32 %v474, %v475
  %v477 = vand.u32 %v476, 4294901760
  %478 = vmatmul.mubr.f32.gmra.mrb[0].mxu0 %v477
  %v479 = vpop.f32.mrb[0].mxu0
  %v480 = vadd.f32 0.0, %v479
  %v481 = vpop.f32.mrb[0].mxu0
  %482 = vmatprep.mubr.f32.mxu0 0.0
  %v483 = vand.u32 %v24, 4294901760
  %v484 = vsub.f32 %v24, %v483
  %v485 = vand.u32 %v484, 4294901760
  %v486 = vsub.f32 %v484, %v485
  %v487 = vand.u32 %v486, 4294901760
  %488 = vmatmul.mubr.f32.gmra.mrb[0].mxu0 %v487
  %v489 = vpop.f32.mrb[0].mxu0
  %v490 = vadd.f32 0.0, %v489
  %v491 = vpop.f32.mrb[0].mxu0
  %492 = vmatprep.mubr.f32.mxu0 0.0
  %v493 = vand.u32 %v25, 4294901760
  %v494 = vsub.f32 %v25, %v493
  %v495 = vand.u32 %v494, 4294901760
  %v496 = vsub.f32 %v494, %v495
  %v497 = vand.u32 %v496, 4294901760
  %498 = vmatmul.mubr.f32.gmra.mrb[0].mxu0 %v497
  %v499 = vpop.f32.mrb[0].mxu0
  %v500 = vadd.f32 0.0, %v499
  %v501 = vpop.f32.mrb[0].mxu0
  %502 = vdwg.mxu0
  %503 = vmatprep.subr.mxu0 0.0
  %v504 = vand.u32 %v276, 4294901760
  %v505 = vsub.f32 %v276, %v504
  %v506 = vand.u32 %v505, 4294901760
  %v507 = vsub.f32 %v505, %v506
  %v508 = vand.u32 %v507, 4294901760
  %509 = vmatpush1.msra.mxu0 %v508
  %510 = vmatprep.subr.mxu0 0.0
  %v511 = vand.u32 %v277, 4294901760
  %v512 = vsub.f32 %v277, %v511
  %v513 = vand.u32 %v512, 4294901760
  %v514 = vsub.f32 %v512, %v513
  %v515 = vand.u32 %v514, 4294901760
  %516 = vmatpush1.msra.mxu0 %v515
  %517 = vmatprep.subr.mxu0 0.0
  %v518 = vand.u32 %v278, 4294901760
  %v519 = vsub.f32 %v278, %v518
  %v520 = vand.u32 %v519, 4294901760
  %v521 = vsub.f32 %v519, %v520
  %v522 = vand.u32 %v521, 4294901760
  %523 = vmatpush1.msra.mxu0 %v522
  %524 = vmatprep.subr.mxu0 0.0
  %v525 = vand.u32 %v279, 4294901760
  %v526 = vsub.f32 %v279, %v525
  %v527 = vand.u32 %v526, 4294901760
  %v528 = vsub.f32 %v526, %v527
  %v529 = vand.u32 %v528, 4294901760
  %530 = vmatpush1.msra.mxu0 %v529
  %531 = vmatprep.subr.mxu0 0.0
  %v532 = vand.u32 %v280, 4294901760
  %v533 = vsub.f32 %v280, %v532
  %v534 = vand.u32 %v533, 4294901760
  %v535 = vsub.f32 %v533, %v534
  %v536 = vand.u32 %v535, 4294901760
  %537 = vmatpush1.msra.mxu0 %v536
  %538 = vmatprep.subr.mxu0 0.0
  %v539 = vand.u32 %v281, 4294901760
  %v540 = vsub.f32 %v281, %v539
  %v541 = vand.u32 %v540, 4294901760
  %v542 = vsub.f32 %v540, %v541
  %v543 = vand.u32 %v542, 4294901760
  %544 = vmatpush1.msra.mxu0 %v543
  %545 = vmatprep.subr.mxu0 0.0
  %v546 = vand.u32 %v282, 4294901760
  %v547 = vsub.f32 %v282, %v546
  %v548 = vand.u32 %v547, 4294901760
  %v549 = vsub.f32 %v547, %v548
  %v550 = vand.u32 %v549, 4294901760
  %551 = vmatpush1.msra.mxu0 %v550
  %552 = vmatprep.subr.mxu0 0.0
  %v553 = vand.u32 %v283, 4294901760
  %v554 = vsub.f32 %v283, %v553
  %v555 = vand.u32 %v554, 4294901760
  %v556 = vsub.f32 %v554, %v555
  %v557 = vand.u32 %v556, 4294901760
  %558 = vmatpush1.msra.mxu0 %v557
  %559 = vmatprep.subr.mxu0 0.0
  %v560 = vand.u32 %v284, 4294901760
  %v561 = vsub.f32 %v284, %v560
  %v562 = vand.u32 %v561, 4294901760
  %v563 = vsub.f32 %v561, %v562
  %v564 = vand.u32 %v563, 4294901760
  %565 = vmatpush1.msra.mxu0 %v564
  %566 = vmatprep.subr.mxu0 0.0
  %v567 = vand.u32 %v285, 4294901760
  %v568 = vsub.f32 %v285, %v567
  %v569 = vand.u32 %v568, 4294901760
  %v570 = vsub.f32 %v568, %v569
  %v571 = vand.u32 %v570, 4294901760
  %572 = vmatpush1.msra.mxu0 %v571
  %573 = vmatprep.subr.mxu0 0.0
  %v574 = vand.u32 %v286, 4294901760
  %v575 = vsub.f32 %v286, %v574
  %v576 = vand.u32 %v575, 4294901760
  %v577 = vsub.f32 %v575, %v576
  %v578 = vand.u32 %v577, 4294901760
  %579 = vmatpush1.msra.mxu0 %v578
  %580 = vmatprep.subr.mxu0 0.0
  %v581 = vand.u32 %v287, 4294901760
  %v582 = vsub.f32 %v287, %v581
  %v583 = vand.u32 %v582, 4294901760
  %v584 = vsub.f32 %v582, %v583
  %v585 = vand.u32 %v584, 4294901760
  %586 = vmatpush1.msra.mxu0 %v585
  %587 = vmatprep.subr.mxu0 0.0
  %v588 = vand.u32 %v288, 4294901760
  %v589 = vsub.f32 %v288, %v588
  %v590 = vand.u32 %v589, 4294901760
  %v591 = vsub.f32 %v589, %v590
  %v592 = vand.u32 %v591, 4294901760
  %593 = vmatpush1.msra.mxu0 %v592
  %594 = vmatprep.subr.mxu0 0.0
  %v595 = vand.u32 %v289, 4294901760
  %v596 = vsub.f32 %v289, %v595
  %v597 = vand.u32 %v596, 4294901760
  %v598 = vsub.f32 %v596, %v597
  %v599 = vand.u32 %v598, 4294901760
  %600 = vmatpush1.msra.mxu0 %v599
  %601 = vmatprep.subr.mxu0 0.0
  %v602 = vand.u32 %v290, 4294901760
  %v603 = vsub.f32 %v290, %v602
  %v604 = vand.u32 %v603, 4294901760
  %v605 = vsub.f32 %v603, %v604
  %v606 = vand.u32 %v605, 4294901760
  %607 = vmatpush1.msra.mxu0 %v606
  %608 = vmatprep.subr.mxu0 0.0
  %v609 = vand.u32 %v291, 4294901760
  %v610 = vsub.f32 %v291, %v609
  %v611 = vand.u32 %v610, 4294901760
  %v612 = vsub.f32 %v610, %v611
  %v613 = vand.u32 %v612, 4294901760
  %614 = vmatpush1.msra.mxu0 %v613
  %615 = vmatprep.subr.mxu0 0.0
  %616 = vmatpush1.msra.mxu0 0.0
  %617 = vmatprep.subr.mxu0 0.0
  %618 = vmatpush1.msra.mxu0 0.0
  %619 = vmatprep.subr.mxu0 0.0
  %620 = vmatpush1.msra.mxu0 0.0
  %621 = vmatprep.subr.mxu0 0.0
  %622 = vmatpush1.msra.mxu0 0.0
  %623 = vmatprep.subr.mxu0 0.0
  %624 = vmatpush1.msra.mxu0 0.0
  %625 = vmatprep.subr.mxu0 0.0
  %626 = vmatpush1.msra.mxu0 0.0
  %627 = vmatprep.subr.mxu0 0.0
  %628 = vmatpush1.msra.mxu0 0.0
  %629 = vmatprep.subr.mxu0 0.0
  %630 = vmatpush1.msra.mxu0 0.0
  %631 = vmatprep.subr.mxu0 0.0
  %632 = vmatpush1.msra.mxu0 0.0
  %633 = vmatprep.subr.mxu0 0.0
  %634 = vmatpush1.msra.mxu0 0.0
  %635 = vmatprep.subr.mxu0 0.0
  %636 = vmatpush1.msra.mxu0 0.0
  %637 = vmatprep.subr.mxu0 0.0
  %638 = vmatpush1.msra.mxu0 0.0
  %639 = vmatprep.subr.mxu0 0.0
  %640 = vmatpush1.msra.mxu0 0.0
  %641 = vmatprep.subr.mxu0 0.0
  %642 = vmatpush1.msra.mxu0 0.0
  %643 = vmatprep.subr.mxu0 0.0
  %644 = vmatpush1.msra.mxu0 0.0
  %645 = vmatprep.subr.mxu0 0.0
  %646 = vmatpush1.msra.mxu0 0.0
  %647 = vmatprep.mubr.f32.mxu0 0.0
  %v648 = vand.u32 %v13, 4294901760
  %649 = vmatmul.mubr.f32.gmra.mrb[0].mxu0 %v648
  %v650 = vpop.f32.mrb[0].mxu0
  %v651 = vadd.f32 %v380, %v650
  %v652 = vpop.f32.mrb[0].mxu0
  %653 = vmatprep.mubr.f32.mxu0 0.0
  %v654 = vand.u32 %v14, 4294901760
  %655 = vmatmul.mubr.f32.gmra.mrb[0].mxu0 %v654
  %v656 = vpop.f32.mrb[0].mxu0
  %v657 = vadd.f32 %v390, %v656
  %v658 = vpop.f32.mrb[0].mxu0
  %659 = vmatprep.mubr.f32.mxu0 0.0
  %v660 = vand.u32 %v15, 4294901760
  %661 = vmatmul.mubr.f32.gmra.mrb[0].mxu0 %v660
  %v662 = vpop.f32.mrb[0].mxu0
  %v663 = vadd.f32 %v400, %v662
  %v664 = vpop.f32.mrb[0].mxu0
  %665 = vmatprep.mubr.f32.mxu0 0.0
  %v666 = vand.u32 %v16, 4294901760
  %667 = vmatmul.mubr.f32.gmra.mrb[0].mxu0 %v666
  %v668 = vpop.f32.mrb[0].mxu0
  %v669 = vadd.f32 %v410, %v668
  %v670 = vpop.f32.mrb[0].mxu0
  %671 = vmatprep.mubr.f32.mxu0 0.0
  %v672 = vand.u32 %v17, 4294901760
  %673 = vmatmul.mubr.f32.gmra.mrb[0].mxu0 %v672
  %v674 = vpop.f32.mrb[0].mxu0
  %v675 = vadd.f32 %v420, %v674
  %v676 = vpop.f32.mrb[0].mxu0
  %677 = vmatprep.mubr.f32.mxu0 0.0
  %v678 = vand.u32 %v18, 4294901760
  %679 = vmatmul.mubr.f32.gmra.mrb[0].mxu0 %v678
  %v680 = vpop.f32.mrb[0].mxu0
  %v681 = vadd.f32 %v430, %v680
  %v682 = vpop.f32.mrb[0].mxu0
  %683 = vmatprep.mubr.f32.mxu0 0.0
  %v684 = vand.u32 %v19, 4294901760
  %685 = vmatmul.mubr.f32.gmra.mrb[0].mxu0 %v684
  %v686 = vpop.f32.mrb[0].mxu0
  %v687 = vadd.f32 %v440, %v686
  %v688 = vpop.f32.mrb[0].mxu0
  %689 = vmatprep.mubr.f32.mxu0 0.0
  %v690 = vand.u32 %v20, 4294901760
  %691 = vmatmul.mubr.f32.gmra.mrb[0].mxu0 %v690
  %v692 = vpop.f32.mrb[0].mxu0
  %v693 = vadd.f32 %v450, %v692
  %v694 = vpop.f32.mrb[0].mxu0
  %695 = vmatprep.mubr.f32.mxu0 0.0
  %v696 = vand.u32 %v21, 4294901760
  %697 = vmatmul.mubr.f32.gmra.mrb[0].mxu0 %v696
  %v698 = vpop.f32.mrb[0].mxu0
  %v699 = vadd.f32 %v460, %v698
  %v700 = vpop.f32.mrb[0].mxu0
  %701 = vmatprep.mubr.f32.mxu0 0.0
  %v702 = vand.u32 %v22, 4294901760
  %703 = vmatmul.mubr.f32.gmra.mrb[0].mxu0 %v702
  %v704 = vpop.f32.mrb[0].mxu0
  %v705 = vadd.f32 %v470, %v704
  %v706 = vpop.f32.mrb[0].mxu0
  %707 = vmatprep.mubr.f32.mxu0 0.0
  %v708 = vand.u32 %v23, 4294901760
  %709 = vmatmul.mubr.f32.gmra.mrb[0].mxu0 %v708
  %v710 = vpop.f32.mrb[0].mxu0
  %v711 = vadd.f32 %v480, %v710
  %v712 = vpop.f32.mrb[0].mxu0
  %713 = vmatprep.mubr.f32.mxu0 0.0
  %v714 = vand.u32 %v24, 4294901760
  %715 = vmatmul.mubr.f32.gmra.mrb[0].mxu0 %v714
  %v716 = vpop.f32.mrb[0].mxu0
  %v717 = vadd.f32 %v490, %v716
  %v718 = vpop.f32.mrb[0].mxu0
  %719 = vmatprep.mubr.f32.mxu0 0.0
  %v720 = vand.u32 %v25, 4294901760
  %721 = vmatmul.mubr.f32.gmra.mrb[0].mxu0 %v720
  %v722 = vpop.f32.mrb[0].mxu0
  %v723 = vadd.f32 %v500, %v722
  %v724 = vpop.f32.mrb[0].mxu0
  %725 = vdwg.mxu0
  %726 = vmatprep.subr.mxu0 0.0
  %v727 = vand.u32 %v276, 4294901760
  %v728 = vsub.f32 %v276, %v727
  %729 = vmatpush1.msra.mxu0 %v728
  %730 = vmatprep.subr.mxu0 0.0
  %v731 = vand.u32 %v277, 4294901760
  %v732 = vsub.f32 %v277, %v731
  %733 = vmatpush1.msra.mxu0 %v732
  %734 = vmatprep.subr.mxu0 0.0
  %v735 = vand.u32 %v278, 4294901760
  %v736 = vsub.f32 %v278, %v735
  %737 = vmatpush1.msra.mxu0 %v736
  %738 = vmatprep.subr.mxu0 0.0
  %v739 = vand.u32 %v279, 4294901760
  %v740 = vsub.f32 %v279, %v739
  %741 = vmatpush1.msra.mxu0 %v740
  %742 = vmatprep.subr.mxu0 0.0
  %v743 = vand.u32 %v280, 4294901760
  %v744 = vsub.f32 %v280, %v743
  %745 = vmatpush1.msra.mxu0 %v744
  %746 = vmatprep.subr.mxu0 0.0
  %v747 = vand.u32 %v281, 4294901760
  %v748 = vsub.f32 %v281, %v747
  %749 = vmatpush1.msra.mxu0 %v748
  %750 = vmatprep.subr.mxu0 0.0
  %v751 = vand.u32 %v282, 4294901760
  %v752 = vsub.f32 %v282, %v751
  %753 = vmatpush1.msra.mxu0 %v752
  %754 = vmatprep.subr.mxu0 0.0
  %v755 = vand.u32 %v283, 4294901760
  %v756 = vsub.f32 %v283, %v755
  %757 = vmatpush1.msra.mxu0 %v756
  %758 = vmatprep.subr.mxu0 0.0
  %v759 = vand.u32 %v284, 4294901760
  %v760 = vsub.f32 %v284, %v759
  %761 = vmatpush1.msra.mxu0 %v760
  %762 = vmatprep.subr.mxu0 0.0
  %v763 = vand.u32 %v285, 4294901760
  %v764 = vsub.f32 %v285, %v763
  %765 = vmatpush1.msra.mxu0 %v764
  %766 = vmatprep.subr.mxu0 0.0
  %v767 = vand.u32 %v286, 4294901760
  %v768 = vsub.f32 %v286, %v767
  %769 = vmatpush1.msra.mxu0 %v768
  %770 = vmatprep.subr.mxu0 0.0
  %v771 = vand.u32 %v287, 4294901760
  %v772 = vsub.f32 %v287, %v771
  %773 = vmatpush1.msra.mxu0 %v772
  %774 = vmatprep.subr.mxu0 0.0
  %v775 = vand.u32 %v288, 4294901760
  %v776 = vsub.f32 %v288, %v775
  %777 = vmatpush1.msra.mxu0 %v776
  %778 = vmatprep.subr.mxu0 0.0
  %v779 = vand.u32 %v289, 4294901760
  %v780 = vsub.f32 %v289, %v779
  %781 = vmatpush1.msra.mxu0 %v780
  %782 = vmatprep.subr.mxu0 0.0
  %v783 = vand.u32 %v290, 4294901760
  %v784 = vsub.f32 %v290, %v783
  %785 = vmatpush1.msra.mxu0 %v784
  %786 = vmatprep.subr.mxu0 0.0
  %v787 = vand.u32 %v291, 4294901760
  %v788 = vsub.f32 %v291, %v787
  %789 = vmatpush1.msra.mxu0 %v788
  %790 = vmatprep.subr.mxu0 0.0
  %791 = vmatpush1.msra.mxu0 0.0
  %792 = vmatprep.subr.mxu0 0.0
  %793 = vmatpush1.msra.mxu0 0.0
  %794 = vmatprep.subr.mxu0 0.0
  %795 = vmatpush1.msra.mxu0 0.0
  %796 = vmatprep.subr.mxu0 0.0
  %797 = vmatpush1.msra.mxu0 0.0
  %798 = vmatprep.subr.mxu0 0.0
  %799 = vmatpush1.msra.mxu0 0.0
  %800 = vmatprep.subr.mxu0 0.0
  %801 = vmatpush1.msra.mxu0 0.0
  %802 = vmatprep.subr.mxu0 0.0
  %803 = vmatpush1.msra.mxu0 0.0
  %804 = vmatprep.subr.mxu0 0.0
  %805 = vmatpush1.msra.mxu0 0.0
  %806 = vmatprep.subr.mxu0 0.0
  %807 = vmatpush1.msra.mxu0 0.0
  %808 = vmatprep.subr.mxu0 0.0
  %809 = vmatpush1.msra.mxu0 0.0
  %810 = vmatprep.subr.mxu0 0.0
  %811 = vmatpush1.msra.mxu0 0.0
  %812 = vmatprep.subr.mxu0 0.0
  %813 = vmatpush1.msra.mxu0 0.0
  %814 = vmatprep.subr.mxu0 0.0
  %815 = vmatpush1.msra.mxu0 0.0
  %816 = vmatprep.subr.mxu0 0.0
  %817 = vmatpush1.msra.mxu0 0.0
  %818 = vmatprep.subr.mxu0 0.0
  %819 = vmatpush1.msra.mxu0 0.0
  %820 = vmatprep.subr.mxu0 0.0
  %821 = vmatpush1.msra.mxu0 0.0
  %822 = vmatprep.mubr.f32.mxu0 0.0
  %v823 = vand.u32 %v13, 4294901760
  %v824 = vsub.f32 %v13, %v823
  %825 = vmatmul.mubr.f32.gmra.mrb[0].mxu0 %v824
  %v826 = vpop.f32.mrb[0].mxu0
  %v827 = vadd.f32 %v651, %v826
  %v828 = vpop.f32.mrb[0].mxu0
  %829 = vmatprep.mubr.f32.mxu0 0.0
  %v830 = vand.u32 %v14, 4294901760
  %v831 = vsub.f32 %v14, %v830
  %832 = vmatmul.mubr.f32.gmra.mrb[0].mxu0 %v831
  %v833 = vpop.f32.mrb[0].mxu0
  %v834 = vadd.f32 %v657, %v833
  %v835 = vpop.f32.mrb[0].mxu0
  %836 = vmatprep.mubr.f32.mxu0 0.0
  %v837 = vand.u32 %v15, 4294901760
  %v838 = vsub.f32 %v15, %v837
  %839 = vmatmul.mubr.f32.gmra.mrb[0].mxu0 %v838
  %v840 = vpop.f32.mrb[0].mxu0
  %v841 = vadd.f32 %v663, %v840
  %v842 = vpop.f32.mrb[0].mxu0
  %843 = vmatprep.mubr.f32.mxu0 0.0
  %v844 = vand.u32 %v16, 4294901760
  %v845 = vsub.f32 %v16, %v844
  %846 = vmatmul.mubr.f32.gmra.mrb[0].mxu0 %v845
  %v847 = vpop.f32.mrb[0].mxu0
  %v848 = vadd.f32 %v669, %v847
  %v849 = vpop.f32.mrb[0].mxu0
  %850 = vmatprep.mubr.f32.mxu0 0.0
  %v851 = vand.u32 %v17, 4294901760
  %v852 = vsub.f32 %v17, %v851
  %853 = vmatmul.mubr.f32.gmra.mrb[0].mxu0 %v852
  %v854 = vpop.f32.mrb[0].mxu0
  %v855 = vadd.f32 %v675, %v854
  %v856 = vpop.f32.mrb[0].mxu0
  %857 = vmatprep.mubr.f32.mxu0 0.0
  %v858 = vand.u32 %v18, 4294901760
  %v859 = vsub.f32 %v18, %v858
  %860 = vmatmul.mubr.f32.gmra.mrb[0].mxu0 %v859
  %v861 = vpop.f32.mrb[0].mxu0
  %v862 = vadd.f32 %v681, %v861
  %v863 = vpop.f32.mrb[0].mxu0
  %864 = vmatprep.mubr.f32.mxu0 0.0
  %v865 = vand.u32 %v19, 4294901760
  %v866 = vsub.f32 %v19, %v865
  %867 = vmatmul.mubr.f32.gmra.mrb[0].mxu0 %v866
  %v868 = vpop.f32.mrb[0].mxu0
  %v869 = vadd.f32 %v687, %v868
  %v870 = vpop.f32.mrb[0].mxu0
  %871 = vmatprep.mubr.f32.mxu0 0.0
  %v872 = vand.u32 %v20, 4294901760
  %v873 = vsub.f32 %v20, %v872
  %874 = vmatmul.mubr.f32.gmra.mrb[0].mxu0 %v873
  %v875 = vpop.f32.mrb[0].mxu0
  %v876 = vadd.f32 %v693, %v875
  %v877 = vpop.f32.mrb[0].mxu0
  %878 = vmatprep.mubr.f32.mxu0 0.0
  %v879 = vand.u32 %v21, 4294901760
  %v880 = vsub.f32 %v21, %v879
  %881 = vmatmul.mubr.f32.gmra.mrb[0].mxu0 %v880
  %v882 = vpop.f32.mrb[0].mxu0
  %v883 = vadd.f32 %v699, %v882
  %v884 = vpop.f32.mrb[0].mxu0
  %885 = vmatprep.mubr.f32.mxu0 0.0
  %v886 = vand.u32 %v22, 4294901760
  %v887 = vsub.f32 %v22, %v886
  %888 = vmatmul.mubr.f32.gmra.mrb[0].mxu0 %v887
  %v889 = vpop.f32.mrb[0].mxu0
  %v890 = vadd.f32 %v705, %v889
  %v891 = vpop.f32.mrb[0].mxu0
  %892 = vmatprep.mubr.f32.mxu0 0.0
  %v893 = vand.u32 %v23, 4294901760
  %v894 = vsub.f32 %v23, %v893
  %895 = vmatmul.mubr.f32.gmra.mrb[0].mxu0 %v894
  %v896 = vpop.f32.mrb[0].mxu0
  %v897 = vadd.f32 %v711, %v896
  %v898 = vpop.f32.mrb[0].mxu0
  %899 = vmatprep.mubr.f32.mxu0 0.0
  %v900 = vand.u32 %v24, 4294901760
  %v901 = vsub.f32 %v24, %v900
  %902 = vmatmul.mubr.f32.gmra.mrb[0].mxu0 %v901
  %v903 = vpop.f32.mrb[0].mxu0
  %v904 = vadd.f32 %v717, %v903
  %v905 = vpop.f32.mrb[0].mxu0
  %906 = vmatprep.mubr.f32.mxu0 0.0
  %v907 = vand.u32 %v25, 4294901760
  %v908 = vsub.f32 %v25, %v907
  %909 = vmatmul.mubr.f32.gmra.mrb[0].mxu0 %v908
  %v910 = vpop.f32.mrb[0].mxu0
  %v911 = vadd.f32 %v723, %v910
  %v912 = vpop.f32.mrb[0].mxu0
  %913 = vdwg.mxu0
  %914 = vmatprep.subr.mxu0 0.0
  %v915 = vand.u32 %v276, 4294901760
  %916 = vmatpush1.msra.mxu0 %v915
  %917 = vmatprep.subr.mxu0 0.0
  %v918 = vand.u32 %v277, 4294901760
  %919 = vmatpush1.msra.mxu0 %v918
  %920 = vmatprep.subr.mxu0 0.0
  %v921 = vand.u32 %v278, 4294901760
  %922 = vmatpush1.msra.mxu0 %v921
  %923 = vmatprep.subr.mxu0 0.0
  %v924 = vand.u32 %v279, 4294901760
  %925 = vmatpush1.msra.mxu0 %v924
  %926 = vmatprep.subr.mxu0 0.0
  %v927 = vand.u32 %v280, 4294901760
  %928 = vmatpush1.msra.mxu0 %v927
  %929 = vmatprep.subr.mxu0 0.0
  %v930 = vand.u32 %v281, 4294901760
  %931 = vmatpush1.msra.mxu0 %v930
  %932 = vmatprep.subr.mxu0 0.0
  %v933 = vand.u32 %v282, 4294901760
  %934 = vmatpush1.msra.mxu0 %v933
  %935 = vmatprep.subr.mxu0 0.0
  %v936 = vand.u32 %v283, 4294901760
  %937 = vmatpush1.msra.mxu0 %v936
  %938 = vmatprep.subr.mxu0 0.0
  %v939 = vand.u32 %v284, 4294901760
  %940 = vmatpush1.msra.mxu0 %v939
  %941 = vmatprep.subr.mxu0 0.0
  %v942 = vand.u32 %v285, 4294901760
  %943 = vmatpush1.msra.mxu0 %v942
  %944 = vmatprep.subr.mxu0 0.0
  %v945 = vand.u32 %v286, 4294901760
  %946 = vmatpush1.msra.mxu0 %v945
  %947 = vmatprep.subr.mxu0 0.0
  %v948 = vand.u32 %v287, 4294901760
  %949 = vmatpush1.msra.mxu0 %v948
  %950 = vmatprep.subr.mxu0 0.0
  %v951 = vand.u32 %v288, 4294901760
  %952 = vmatpush1.msra.mxu0 %v951
  %953 = vmatprep.subr.mxu0 0.0
  %v954 = vand.u32 %v289, 4294901760
  %955 = vmatpush1.msra.mxu0 %v954
  %956 = vmatprep.subr.mxu0 0.0
  %v957 = vand.u32 %v290, 4294901760
  %958 = vmatpush1.msra.mxu0 %v957
  %959 = vmatprep.subr.mxu0 0.0
  %v960 = vand.u32 %v291, 4294901760
  %961 = vmatpush1.msra.mxu0 %v960
  %962 = vmatprep.subr.mxu0 0.0
  %963 = vmatpush1.msra.mxu0 0.0
  %964 = vmatprep.subr.mxu0 0.0
  %965 = vmatpush1.msra.mxu0 0.0
  %966 = vmatprep.subr.mxu0 0.0
  %967 = vmatpush1.msra.mxu0 0.0
  %968 = vmatprep.subr.mxu0 0.0
  %969 = vmatpush1.msra.mxu0 0.0
  %970 = vmatprep.subr.mxu0 0.0
  %971 = vmatpush1.msra.mxu0 0.0
  %972 = vmatprep.subr.mxu0 0.0
  %973 = vmatpush1.msra.mxu0 0.0
  %974 = vmatprep.subr.mxu0 0.0
  %975 = vmatpush1.msra.mxu0 0.0
  %976 = vmatprep.subr.mxu0 0.0
  %977 = vmatpush1.msra.mxu0 0.0
  %978 = vmatprep.subr.mxu0 0.0
  %979 = vmatpush1.msra.mxu0 0.0
  %980 = vmatprep.subr.mxu0 0.0
  %981 = vmatpush1.msra.mxu0 0.0
  %982 = vmatprep.subr.mxu0 0.0
  %983 = vmatpush1.msra.mxu0 0.0
  %984 = vmatprep.subr.mxu0 0.0
  %985 = vmatpush1.msra.mxu0 0.0
  %986 = vmatprep.subr.mxu0 0.0
  %987 = vmatpush1.msra.mxu0 0.0
  %988 = vmatprep.subr.mxu0 0.0
  %989 = vmatpush1.msra.mxu0 0.0
  %990 = vmatprep.subr.mxu0 0.0
  %991 = vmatpush1.msra.mxu0 0.0
  %992 = vmatprep.subr.mxu0 0.0
  %993 = vmatpush1.msra.mxu0 0.0
  %994 = vmatprep.mubr.f32.mxu0 0.0
  %v995 = vand.u32 %v13, 4294901760
  %v996 = vsub.f32 %v13, %v995
  %v997 = vand.u32 %v996, 4294901760
  %998 = vmatmul.mubr.f32.gmra.mrb[0].mxu0 %v997
  %v999 = vpop.f32.mrb[0].mxu0
  %v1000 = vadd.f32 %v827, %v999
  %v1001 = vpop.f32.mrb[0].mxu0
  %1002 = vmatprep.mubr.f32.mxu0 0.0
  %v1003 = vand.u32 %v14, 4294901760
  %v1004 = vsub.f32 %v14, %v1003
  %v1005 = vand.u32 %v1004, 4294901760
  %1006 = vmatmul.mubr.f32.gmra.mrb[0].mxu0 %v1005
  %v1007 = vpop.f32.mrb[0].mxu0
  %v1008 = vadd.f32 %v834, %v1007
  %v1009 = vpop.f32.mrb[0].mxu0
  %1010 = vmatprep.mubr.f32.mxu0 0.0
  %v1011 = vand.u32 %v15, 4294901760
  %v1012 = vsub.f32 %v15, %v1011
  %v1013 = vand.u32 %v1012, 4294901760
  %1014 = vmatmul.mubr.f32.gmra.mrb[0].mxu0 %v1013
  %v1015 = vpop.f32.mrb[0].mxu0
  %v1016 = vadd.f32 %v841, %v1015
  %v1017 = vpop.f32.mrb[0].mxu0
  %1018 = vmatprep.mubr.f32.mxu0 0.0
  %v1019 = vand.u32 %v16, 4294901760
  %v1020 = vsub.f32 %v16, %v1019
  %v1021 = vand.u32 %v1020, 4294901760
  %1022 = vmatmul.mubr.f32.gmra.mrb[0].mxu0 %v1021
  %v1023 = vpop.f32.mrb[0].mxu0
  %v1024 = vadd.f32 %v848, %v1023
  %v1025 = vpop.f32.mrb[0].mxu0
  %1026 = vmatprep.mubr.f32.mxu0 0.0
  %v1027 = vand.u32 %v17, 4294901760
  %v1028 = vsub.f32 %v17, %v1027
  %v1029 = vand.u32 %v1028, 4294901760
  %1030 = vmatmul.mubr.f32.gmra.mrb[0].mxu0 %v1029
  %v1031 = vpop.f32.mrb[0].mxu0
  %v1032 = vadd.f32 %v855, %v1031
  %v1033 = vpop.f32.mrb[0].mxu0
  %1034 = vmatprep.mubr.f32.mxu0 0.0
  %v1035 = vand.u32 %v18, 4294901760
  %v1036 = vsub.f32 %v18, %v1035
  %v1037 = vand.u32 %v1036, 4294901760
  %1038 = vmatmul.mubr.f32.gmra.mrb[0].mxu0 %v1037
  %v1039 = vpop.f32.mrb[0].mxu0
  %v1040 = vadd.f32 %v862, %v1039
  %v1041 = vpop.f32.mrb[0].mxu0
  %1042 = vmatprep.mubr.f32.mxu0 0.0
  %v1043 = vand.u32 %v19, 4294901760
  %v1044 = vsub.f32 %v19, %v1043
  %v1045 = vand.u32 %v1044, 4294901760
  %1046 = vmatmul.mubr.f32.gmra.mrb[0].mxu0 %v1045
  %v1047 = vpop.f32.mrb[0].mxu0
  %v1048 = vadd.f32 %v869, %v1047
  %v1049 = vpop.f32.mrb[0].mxu0
  %1050 = vmatprep.mubr.f32.mxu0 0.0
  %v1051 = vand.u32 %v20, 4294901760
  %v1052 = vsub.f32 %v20, %v1051
  %v1053 = vand.u32 %v1052, 4294901760
  %1054 = vmatmul.mubr.f32.gmra.mrb[0].mxu0 %v1053
  %v1055 = vpop.f32.mrb[0].mxu0
  %v1056 = vadd.f32 %v876, %v1055
  %v1057 = vpop.f32.mrb[0].mxu0
  %1058 = vmatprep.mubr.f32.mxu0 0.0
  %v1059 = vand.u32 %v21, 4294901760
  %v1060 = vsub.f32 %v21, %v1059
  %v1061 = vand.u32 %v1060, 4294901760
  %1062 = vmatmul.mubr.f32.gmra.mrb[0].mxu0 %v1061
  %v1063 = vpop.f32.mrb[0].mxu0
  %v1064 = vadd.f32 %v883, %v1063
  %v1065 = vpop.f32.mrb[0].mxu0
  %1066 = vmatprep.mubr.f32.mxu0 0.0
  %v1067 = vand.u32 %v22, 4294901760
  %v1068 = vsub.f32 %v22, %v1067
  %v1069 = vand.u32 %v1068, 4294901760
  %1070 = vmatmul.mubr.f32.gmra.mrb[0].mxu0 %v1069
  %v1071 = vpop.f32.mrb[0].mxu0
  %v1072 = vadd.f32 %v890, %v1071
  %v1073 = vpop.f32.mrb[0].mxu0
  %1074 = vmatprep.mubr.f32.mxu0 0.0
  %v1075 = vand.u32 %v23, 4294901760
  %v1076 = vsub.f32 %v23, %v1075
  %v1077 = vand.u32 %v1076, 4294901760
  %1078 = vmatmul.mubr.f32.gmra.mrb[0].mxu0 %v1077
  %v1079 = vpop.f32.mrb[0].mxu0
  %v1080 = vadd.f32 %v897, %v1079
  %v1081 = vpop.f32.mrb[0].mxu0
  %1082 = vmatprep.mubr.f32.mxu0 0.0
  %v1083 = vand.u32 %v24, 4294901760
  %v1084 = vsub.f32 %v24, %v1083
  %v1085 = vand.u32 %v1084, 4294901760
  %1086 = vmatmul.mubr.f32.gmra.mrb[0].mxu0 %v1085
  %v1087 = vpop.f32.mrb[0].mxu0
  %v1088 = vadd.f32 %v904, %v1087
  %v1089 = vpop.f32.mrb[0].mxu0
  %1090 = vmatprep.mubr.f32.mxu0 0.0
  %v1091 = vand.u32 %v25, 4294901760
  %v1092 = vsub.f32 %v25, %v1091
  %v1093 = vand.u32 %v1092, 4294901760
  %1094 = vmatmul.mubr.f32.gmra.mrb[0].mxu0 %v1093
  %v1095 = vpop.f32.mrb[0].mxu0
  %v1096 = vadd.f32 %v911, %v1095
  %v1097 = vpop.f32.mrb[0].mxu0
  %1098 = vdwg.mxu0
  %1099 = vmatprep.subr.mxu0 0.0
  %v1100 = vand.u32 %v276, 4294901760
  %v1101 = vsub.f32 %v276, %v1100
  %v1102 = vand.u32 %v1101, 4294901760
  %1103 = vmatpush1.msra.mxu0 %v1102
  %1104 = vmatprep.subr.mxu0 0.0
  %v1105 = vand.u32 %v277, 4294901760
  %v1106 = vsub.f32 %v277, %v1105
  %v1107 = vand.u32 %v1106, 4294901760
  %1108 = vmatpush1.msra.mxu0 %v1107
  %1109 = vmatprep.subr.mxu0 0.0
  %v1110 = vand.u32 %v278, 4294901760
  %v1111 = vsub.f32 %v278, %v1110
  %v1112 = vand.u32 %v1111, 4294901760
  %1113 = vmatpush1.msra.mxu0 %v1112
  %1114 = vmatprep.subr.mxu0 0.0
  %v1115 = vand.u32 %v279, 4294901760
  %v1116 = vsub.f32 %v279, %v1115
  %v1117 = vand.u32 %v1116, 4294901760
  %1118 = vmatpush1.msra.mxu0 %v1117
  %1119 = vmatprep.subr.mxu0 0.0
  %v1120 = vand.u32 %v280, 4294901760
  %v1121 = vsub.f32 %v280, %v1120
  %v1122 = vand.u32 %v1121, 4294901760
  %1123 = vmatpush1.msra.mxu0 %v1122
  %1124 = vmatprep.subr.mxu0 0.0
  %v1125 = vand.u32 %v281, 4294901760
  %v1126 = vsub.f32 %v281, %v1125
  %v1127 = vand.u32 %v1126, 4294901760
  %1128 = vmatpush1.msra.mxu0 %v1127
  %1129 = vmatprep.subr.mxu0 0.0
  %v1130 = vand.u32 %v282, 4294901760
  %v1131 = vsub.f32 %v282, %v1130
  %v1132 = vand.u32 %v1131, 4294901760
  %1133 = vmatpush1.msra.mxu0 %v1132
  %1134 = vmatprep.subr.mxu0 0.0
  %v1135 = vand.u32 %v283, 4294901760
  %v1136 = vsub.f32 %v283, %v1135
  %v1137 = vand.u32 %v1136, 4294901760
  %1138 = vmatpush1.msra.mxu0 %v1137
  %1139 = vmatprep.subr.mxu0 0.0
  %v1140 = vand.u32 %v284, 4294901760
  %v1141 = vsub.f32 %v284, %v1140
  %v1142 = vand.u32 %v1141, 4294901760
  %1143 = vmatpush1.msra.mxu0 %v1142
  %1144 = vmatprep.subr.mxu0 0.0
  %v1145 = vand.u32 %v285, 4294901760
  %v1146 = vsub.f32 %v285, %v1145
  %v1147 = vand.u32 %v1146, 4294901760
  %1148 = vmatpush1.msra.mxu0 %v1147
  %1149 = vmatprep.subr.mxu0 0.0
  %v1150 = vand.u32 %v286, 4294901760
  %v1151 = vsub.f32 %v286, %v1150
  %v1152 = vand.u32 %v1151, 4294901760
  %1153 = vmatpush1.msra.mxu0 %v1152
  %1154 = vmatprep.subr.mxu0 0.0
  %v1155 = vand.u32 %v287, 4294901760
  %v1156 = vsub.f32 %v287, %v1155
  %v1157 = vand.u32 %v1156, 4294901760
  %1158 = vmatpush1.msra.mxu0 %v1157
  %1159 = vmatprep.subr.mxu0 0.0
  %v1160 = vand.u32 %v288, 4294901760
  %v1161 = vsub.f32 %v288, %v1160
  %v1162 = vand.u32 %v1161, 4294901760
  %1163 = vmatpush1.msra.mxu0 %v1162
  %1164 = vmatprep.subr.mxu0 0.0
  %v1165 = vand.u32 %v289, 4294901760
  %v1166 = vsub.f32 %v289, %v1165
  %v1167 = vand.u32 %v1166, 4294901760
  %1168 = vmatpush1.msra.mxu0 %v1167
  %1169 = vmatprep.subr.mxu0 0.0
  %v1170 = vand.u32 %v290, 4294901760
  %v1171 = vsub.f32 %v290, %v1170
  %v1172 = vand.u32 %v1171, 4294901760
  %1173 = vmatpush1.msra.mxu0 %v1172
  %1174 = vmatprep.subr.mxu0 0.0
  %v1175 = vand.u32 %v291, 4294901760
  %v1176 = vsub.f32 %v291, %v1175
  %v1177 = vand.u32 %v1176, 4294901760
  %1178 = vmatpush1.msra.mxu0 %v1177
  %1179 = vmatprep.subr.mxu0 0.0
  %1180 = vmatpush1.msra.mxu0 0.0
  %1181 = vmatprep.subr.mxu0 0.0
  %1182 = vmatpush1.msra.mxu0 0.0
  %1183 = vmatprep.subr.mxu0 0.0
  %1184 = vmatpush1.msra.mxu0 0.0
  %1185 = vmatprep.subr.mxu0 0.0
  %1186 = vmatpush1.msra.mxu0 0.0
  %1187 = vmatprep.subr.mxu0 0.0
  %1188 = vmatpush1.msra.mxu0 0.0
  %1189 = vmatprep.subr.mxu0 0.0
  %1190 = vmatpush1.msra.mxu0 0.0
  %1191 = vmatprep.subr.mxu0 0.0
  %1192 = vmatpush1.msra.mxu0 0.0
  %1193 = vmatprep.subr.mxu0 0.0
  %1194 = vmatpush1.msra.mxu0 0.0
  %1195 = vmatprep.subr.mxu0 0.0
  %1196 = vmatpush1.msra.mxu0 0.0
  %1197 = vmatprep.subr.mxu0 0.0
  %1198 = vmatpush1.msra.mxu0 0.0
  %1199 = vmatprep.subr.mxu0 0.0
  %1200 = vmatpush1.msra.mxu0 0.0
  %1201 = vmatprep.subr.mxu0 0.0
  %1202 = vmatpush1.msra.mxu0 0.0
  %1203 = vmatprep.subr.mxu0 0.0
  %1204 = vmatpush1.msra.mxu0 0.0
  %1205 = vmatprep.subr.mxu0 0.0
  %1206 = vmatpush1.msra.mxu0 0.0
  %1207 = vmatprep.subr.mxu0 0.0
  %1208 = vmatpush1.msra.mxu0 0.0
  %1209 = vmatprep.subr.mxu0 0.0
  %1210 = vmatpush1.msra.mxu0 0.0
  %1211 = vmatprep.mubr.f32.mxu0 0.0
  %v1212 = vand.u32 %v13, 4294901760
  %1213 = vmatmul.mubr.f32.gmra.mrb[0].mxu0 %v1212
  %v1214 = vpop.f32.mrb[0].mxu0
  %v1215 = vadd.f32 %v1000, %v1214
  %v1216 = vpop.f32.mrb[0].mxu0
  %1217 = vmatprep.mubr.f32.mxu0 0.0
  %v1218 = vand.u32 %v14, 4294901760
  %1219 = vmatmul.mubr.f32.gmra.mrb[0].mxu0 %v1218
  %v1220 = vpop.f32.mrb[0].mxu0
  %v1221 = vadd.f32 %v1008, %v1220
  %v1222 = vpop.f32.mrb[0].mxu0
  %1223 = vmatprep.mubr.f32.mxu0 0.0
  %v1224 = vand.u32 %v15, 4294901760
  %1225 = vmatmul.mubr.f32.gmra.mrb[0].mxu0 %v1224
  %v1226 = vpop.f32.mrb[0].mxu0
  %v1227 = vadd.f32 %v1016, %v1226
  %v1228 = vpop.f32.mrb[0].mxu0
  %1229 = vmatprep.mubr.f32.mxu0 0.0
  %v1230 = vand.u32 %v16, 4294901760
  %1231 = vmatmul.mubr.f32.gmra.mrb[0].mxu0 %v1230
  %v1232 = vpop.f32.mrb[0].mxu0
  %v1233 = vadd.f32 %v1024, %v1232
  %v1234 = vpop.f32.mrb[0].mxu0
  %1235 = vmatprep.mubr.f32.mxu0 0.0
  %v1236 = vand.u32 %v17, 4294901760
  %1237 = vmatmul.mubr.f32.gmra.mrb[0].mxu0 %v1236
  %v1238 = vpop.f32.mrb[0].mxu0
  %v1239 = vadd.f32 %v1032, %v1238
  %v1240 = vpop.f32.mrb[0].mxu0
  %1241 = vmatprep.mubr.f32.mxu0 0.0
  %v1242 = vand.u32 %v18, 4294901760
  %1243 = vmatmul.mubr.f32.gmra.mrb[0].mxu0 %v1242
  %v1244 = vpop.f32.mrb[0].mxu0
  %v1245 = vadd.f32 %v1040, %v1244
  %v1246 = vpop.f32.mrb[0].mxu0
  %1247 = vmatprep.mubr.f32.mxu0 0.0
  %v1248 = vand.u32 %v19, 4294901760
  %1249 = vmatmul.mubr.f32.gmra.mrb[0].mxu0 %v1248
  %v1250 = vpop.f32.mrb[0].mxu0
  %v1251 = vadd.f32 %v1048, %v1250
  %v1252 = vpop.f32.mrb[0].mxu0
  %1253 = vmatprep.mubr.f32.mxu0 0.0
  %v1254 = vand.u32 %v20, 4294901760
  %1255 = vmatmul.mubr.f32.gmra.mrb[0].mxu0 %v1254
  %v1256 = vpop.f32.mrb[0].mxu0
  %v1257 = vadd.f32 %v1056, %v1256
  %v1258 = vpop.f32.mrb[0].mxu0
  %1259 = vmatprep.mubr.f32.mxu0 0.0
  %v1260 = vand.u32 %v21, 4294901760
  %1261 = vmatmul.mubr.f32.gmra.mrb[0].mxu0 %v1260
  %v1262 = vpop.f32.mrb[0].mxu0
  %v1263 = vadd.f32 %v1064, %v1262
  %v1264 = vpop.f32.mrb[0].mxu0
  %1265 = vmatprep.mubr.f32.mxu0 0.0
  %v1266 = vand.u32 %v22, 4294901760
  %1267 = vmatmul.mubr.f32.gmra.mrb[0].mxu0 %v1266
  %v1268 = vpop.f32.mrb[0].mxu0
  %v1269 = vadd.f32 %v1072, %v1268
  %v1270 = vpop.f32.mrb[0].mxu0
  %1271 = vmatprep.mubr.f32.mxu0 0.0
  %v1272 = vand.u32 %v23, 4294901760
  %1273 = vmatmul.mubr.f32.gmra.mrb[0].mxu0 %v1272
  %v1274 = vpop.f32.mrb[0].mxu0
  %v1275 = vadd.f32 %v1080, %v1274
  %v1276 = vpop.f32.mrb[0].mxu0
  %1277 = vmatprep.mubr.f32.mxu0 0.0
  %v1278 = vand.u32 %v24, 4294901760
  %1279 = vmatmul.mubr.f32.gmra.mrb[0].mxu0 %v1278
  %v1280 = vpop.f32.mrb[0].mxu0
  %v1281 = vadd.f32 %v1088, %v1280
  %v1282 = vpop.f32.mrb[0].mxu0
  %1283 = vmatprep.mubr.f32.mxu0 0.0
  %v1284 = vand.u32 %v25, 4294901760
  %1285 = vmatmul.mubr.f32.gmra.mrb[0].mxu0 %v1284
  %v1286 = vpop.f32.mrb[0].mxu0
  %v1287 = vadd.f32 %v1096, %v1286
  %v1288 = vpop.f32.mrb[0].mxu0
  %1289 = vdwg.mxu0
  %1290 = vmatprep.subr.mxu0 0.0
  %v1291 = vand.u32 %v276, 4294901760
  %1292 = vmatpush1.msra.mxu0 %v1291
  %1293 = vmatprep.subr.mxu0 0.0
  %v1294 = vand.u32 %v277, 4294901760
  %1295 = vmatpush1.msra.mxu0 %v1294
  %1296 = vmatprep.subr.mxu0 0.0
  %v1297 = vand.u32 %v278, 4294901760
  %1298 = vmatpush1.msra.mxu0 %v1297
  %1299 = vmatprep.subr.mxu0 0.0
  %v1300 = vand.u32 %v279, 4294901760
  %1301 = vmatpush1.msra.mxu0 %v1300
  %1302 = vmatprep.subr.mxu0 0.0
  %v1303 = vand.u32 %v280, 4294901760
  %1304 = vmatpush1.msra.mxu0 %v1303
  %1305 = vmatprep.subr.mxu0 0.0
  %v1306 = vand.u32 %v281, 4294901760
  %1307 = vmatpush1.msra.mxu0 %v1306
  %1308 = vmatprep.subr.mxu0 0.0
  %v1309 = vand.u32 %v282, 4294901760
  %1310 = vmatpush1.msra.mxu0 %v1309
  %1311 = vmatprep.subr.mxu0 0.0
  %v1312 = vand.u32 %v283, 4294901760
  %1313 = vmatpush1.msra.mxu0 %v1312
  %1314 = vmatprep.subr.mxu0 0.0
  %v1315 = vand.u32 %v284, 4294901760
  %1316 = vmatpush1.msra.mxu0 %v1315
  %1317 = vmatprep.subr.mxu0 0.0
  %v1318 = vand.u32 %v285, 4294901760
  %1319 = vmatpush1.msra.mxu0 %v1318
  %1320 = vmatprep.subr.mxu0 0.0
  %v1321 = vand.u32 %v286, 4294901760
  %1322 = vmatpush1.msra.mxu0 %v1321
  %1323 = vmatprep.subr.mxu0 0.0
  %v1324 = vand.u32 %v287, 4294901760
  %1325 = vmatpush1.msra.mxu0 %v1324
  %1326 = vmatprep.subr.mxu0 0.0
  %v1327 = vand.u32 %v288, 4294901760
  %1328 = vmatpush1.msra.mxu0 %v1327
  %1329 = vmatprep.subr.mxu0 0.0
  %v1330 = vand.u32 %v289, 4294901760
  %1331 = vmatpush1.msra.mxu0 %v1330
  %1332 = vmatprep.subr.mxu0 0.0
  %v1333 = vand.u32 %v290, 4294901760
  %1334 = vmatpush1.msra.mxu0 %v1333
  %1335 = vmatprep.subr.mxu0 0.0
  %v1336 = vand.u32 %v291, 4294901760
  %1337 = vmatpush1.msra.mxu0 %v1336
  %1338 = vmatprep.subr.mxu0 0.0
  %1339 = vmatpush1.msra.mxu0 0.0
  %1340 = vmatprep.subr.mxu0 0.0
  %1341 = vmatpush1.msra.mxu0 0.0
  %1342 = vmatprep.subr.mxu0 0.0
  %1343 = vmatpush1.msra.mxu0 0.0
  %1344 = vmatprep.subr.mxu0 0.0
  %1345 = vmatpush1.msra.mxu0 0.0
  %1346 = vmatprep.subr.mxu0 0.0
  %1347 = vmatpush1.msra.mxu0 0.0
  %1348 = vmatprep.subr.mxu0 0.0
  %1349 = vmatpush1.msra.mxu0 0.0
  %1350 = vmatprep.subr.mxu0 0.0
  %1351 = vmatpush1.msra.mxu0 0.0
  %1352 = vmatprep.subr.mxu0 0.0
  %1353 = vmatpush1.msra.mxu0 0.0
  %1354 = vmatprep.subr.mxu0 0.0
  %1355 = vmatpush1.msra.mxu0 0.0
  %1356 = vmatprep.subr.mxu0 0.0
  %1357 = vmatpush1.msra.mxu0 0.0
  %1358 = vmatprep.subr.mxu0 0.0
  %1359 = vmatpush1.msra.mxu0 0.0
  %1360 = vmatprep.subr.mxu0 0.0
  %1361 = vmatpush1.msra.mxu0 0.0
  %1362 = vmatprep.subr.mxu0 0.0
  %1363 = vmatpush1.msra.mxu0 0.0
  %1364 = vmatprep.subr.mxu0 0.0
  %1365 = vmatpush1.msra.mxu0 0.0
  %1366 = vmatprep.subr.mxu0 0.0
  %1367 = vmatpush1.msra.mxu0 0.0
  %1368 = vmatprep.subr.mxu0 0.0
  %1369 = vmatpush1.msra.mxu0 0.0
  %1370 = vmatprep.mubr.f32.mxu0 0.0
  %v1371 = vand.u32 %v13, 4294901760
  %1372 = vmatmul.mubr.f32.gmra.mrb[0].mxu0 %v1371
  %v1373 = vpop.f32.mrb[0].mxu0
  %v1374 = vadd.f32 %v1215, %v1373
  %v1375 = vpop.f32.mrb[0].mxu0
  %1376 = vmatprep.mubr.f32.mxu0 0.0
  %v1377 = vand.u32 %v14, 4294901760
  %1378 = vmatmul.mubr.f32.gmra.mrb[0].mxu0 %v1377
  %v1379 = vpop.f32.mrb[0].mxu0
  %v1380 = vadd.f32 %v1221, %v1379
  %v1381 = vpop.f32.mrb[0].mxu0
  %1382 = vmatprep.mubr.f32.mxu0 0.0
  %v1383 = vand.u32 %v15, 4294901760
  %1384 = vmatmul.mubr.f32.gmra.mrb[0].mxu0 %v1383
  %v1385 = vpop.f32.mrb[0].mxu0
  %v1386 = vadd.f32 %v1227, %v1385
  %v1387 = vpop.f32.mrb[0].mxu0
  %1388 = vmatprep.mubr.f32.mxu0 0.0
  %v1389 = vand.u32 %v16, 4294901760
  %1390 = vmatmul.mubr.f32.gmra.mrb[0].mxu0 %v1389
  %v1391 = vpop.f32.mrb[0].mxu0
  %v1392 = vadd.f32 %v1233, %v1391
  %v1393 = vpop.f32.mrb[0].mxu0
  %1394 = vmatprep.mubr.f32.mxu0 0.0
  %v1395 = vand.u32 %v17, 4294901760
  %1396 = vmatmul.mubr.f32.gmra.mrb[0].mxu0 %v1395
  %v1397 = vpop.f32.mrb[0].mxu0
  %v1398 = vadd.f32 %v1239, %v1397
  %v1399 = vpop.f32.mrb[0].mxu0
  %1400 = vmatprep.mubr.f32.mxu0 0.0
  %v1401 = vand.u32 %v18, 4294901760
  %1402 = vmatmul.mubr.f32.gmra.mrb[0].mxu0 %v1401
  %v1403 = vpop.f32.mrb[0].mxu0
  %v1404 = vadd.f32 %v1245, %v1403
  %v1405 = vpop.f32.mrb[0].mxu0
  %1406 = vmatprep.mubr.f32.mxu0 0.0
  %v1407 = vand.u32 %v19, 4294901760
  %1408 = vmatmul.mubr.f32.gmra.mrb[0].mxu0 %v1407
  %v1409 = vpop.f32.mrb[0].mxu0
  %v1410 = vadd.f32 %v1251, %v1409
  %v1411 = vpop.f32.mrb[0].mxu0
  %1412 = vmatprep.mubr.f32.mxu0 0.0
  %v1413 = vand.u32 %v20, 4294901760
  %1414 = vmatmul.mubr.f32.gmra.mrb[0].mxu0 %v1413
  %v1415 = vpop.f32.mrb[0].mxu0
  %v1416 = vadd.f32 %v1257, %v1415
  %v1417 = vpop.f32.mrb[0].mxu0
  %1418 = vmatprep.mubr.f32.mxu0 0.0
  %v1419 = vand.u32 %v21, 4294901760
  %1420 = vmatmul.mubr.f32.gmra.mrb[0].mxu0 %v1419
  %v1421 = vpop.f32.mrb[0].mxu0
  %v1422 = vadd.f32 %v1263, %v1421
  %v1423 = vpop.f32.mrb[0].mxu0
  %1424 = vmatprep.mubr.f32.mxu0 0.0
  %v1425 = vand.u32 %v22, 4294901760
  %1426 = vmatmul.mubr.f32.gmra.mrb[0].mxu0 %v1425
  %v1427 = vpop.f32.mrb[0].mxu0
  %v1428 = vadd.f32 %v1269, %v1427
  %v1429 = vpop.f32.mrb[0].mxu0
  %1430 = vmatprep.mubr.f32.mxu0 0.0
  %v1431 = vand.u32 %v23, 4294901760
  %1432 = vmatmul.mubr.f32.gmra.mrb[0].mxu0 %v1431
  %v1433 = vpop.f32.mrb[0].mxu0
  %v1434 = vadd.f32 %v1275, %v1433
  %v1435 = vpop.f32.mrb[0].mxu0
  %1436 = vmatprep.mubr.f32.mxu0 0.0
  %v1437 = vand.u32 %v24, 4294901760
  %1438 = vmatmul.mubr.f32.gmra.mrb[0].mxu0 %v1437
  %v1439 = vpop.f32.mrb[0].mxu0
  %v1440 = vadd.f32 %v1281, %v1439
  %v1441 = vpop.f32.mrb[0].mxu0
  %1442 = vmatprep.mubr.f32.mxu0 0.0
  %v1443 = vand.u32 %v25, 4294901760
  %1444 = vmatmul.mubr.f32.gmra.mrb[0].mxu0 %v1443
  %v1445 = vpop.f32.mrb[0].mxu0
  %v1446 = vadd.f32 %v1287, %v1445
  %v1447 = vpop.f32.mrb[0].mxu0
  %1448 = vdwg.mxu0
  %v1449 = vsub.f32 1.0, %v1374
  %v1450 = vsub.f32 1.0, %v1380
  %v1451 = vsub.f32 1.0, %v1386
  %v1452 = vsub.f32 1.0, %v1392
  %v1453 = vsub.f32 1.0, %v1398
  %v1454 = vsub.f32 1.0, %v1404
  %v1455 = vsub.f32 1.0, %v1410
  %v1456 = vsub.f32 1.0, %v1416
  %v1457 = vsub.f32 1.0, %v1422
  %v1458 = vsub.f32 1.0, %v1428
  %v1459 = vsub.f32 1.0, %v1434
  %v1460 = vsub.f32 1.0, %v1440
  %v1461 = vsub.f32 1.0, %v1446
  %v1462 = vand.u32 2147483647, %v1449
  %v1463 = vand.u32 2147483647, %v1450
  %v1464 = vand.u32 2147483647, %v1451
  %v1465 = vand.u32 2147483647, %v1452
  %v1466 = vand.u32 2147483647, %v1453
  %v1467 = vand.u32 2147483647, %v1454
  %v1468 = vand.u32 2147483647, %v1455
  %v1469 = vand.u32 2147483647, %v1456
  %v1470 = vand.u32 2147483647, %v1457
  %v1471 = vand.u32 2147483647, %v1458
  %v1472 = vand.u32 2147483647, %v1459
  %v1473 = vand.u32 2147483647, %v1460
  %v1474 = vand.u32 2147483647, %v1461
  %1475 = vst.msk [vmem:[%s3] sm:$0xff] %vm262, %v1462
  %1476 = vst.msk [vmem:[%s3 + $0x8] sm:$0xff] %vm262, %v1463
  %1477 = vst.msk [vmem:[%s3 + $0x10] sm:$0xff] %vm262, %v1464
  %1478 = vst.msk [vmem:[%s3 + $0x18] sm:$0xff] %vm262, %v1465
  %1479 = vst.msk [vmem:[%s3 + $0x20] sm:$0xff] %vm262, %v1466
  %1480 = vst.msk [vmem:[%s3 + $0x28] sm:$0xff] %vm262, %v1467
  %1481 = vst.msk [vmem:[%s3 + $0x30] sm:$0xff] %vm262, %v1468
  %1482 = vst.msk [vmem:[%s3 + $0x38] sm:$0xff] %vm262, %v1469
  %1483 = vst.msk [vmem:[%s3 + $0x40] sm:$0xff] %vm262, %v1470
  %1484 = vst.msk [vmem:[%s3 + $0x48] sm:$0xff] %vm262, %v1471
  %1485 = vst.msk [vmem:[%s3 + $0x50] sm:$0xff] %vm262, %v1472
  %1486 = vst.msk [vmem:[%s3 + $0x58] sm:$0xff] %vm262, %v1473
  %1487 = vst.msk [vmem:[%s3 + $0x60] sm:$0xff] %vm262, %v1474
  // Predicated region
  $region10: #{tpu_custom_call.1} parent=0 // pred_check
    _
  $region11: #{tpu_custom_call.1} parent=0 // pred_check_branch
    %1489 = sbr.rel (0) target = $region13
  $region12: #{tpu_custom_call.1} parent=0 // pred_region
    _
  $region13: #{tpu_custom_call.1} parent=0 // pred_fallthru
    _
  // Predicated region
  $region14: #{tpu_custom_call.1} parent=0 // pred_check
    _
  $region15: #{tpu_custom_call.1} parent=0 // pred_check_branch
    %1491 = sbr.rel (0) target = $region17
  $region16: #{tpu_custom_call.1} parent=0 // pred_region
    _
  $region17: #{tpu_custom_call.1} parent=0 // pred_fallthru
    _
  // Predicated region
  $region18: #{tpu_custom_call.1} parent=0 // pred_check
    _
  $region19: #{tpu_custom_call.1} parent=0 // pred_check_branch
    %1493 = sbr.rel (0) target = $region21
  $region20: #{tpu_custom_call.1} parent=0 // pred_region
    _
  $region21: #{tpu_custom_call.1} parent=0 // pred_fallthru
    _
  // Predicated region
  $region22: #{tpu_custom_call.1} parent=0 // pred_check
    _
  $region23: #{tpu_custom_call.1} parent=0 // pred_check_branch
    %1495 = sbr.rel (0) target = $region25
  $region24: #{tpu_custom_call.1} parent=0 // pred_region
    _
  $region25: #{tpu_custom_call.1} parent=0 // pred_fallthru
    _

</llo_original>
